<compile_context>
chip_gen: v7x
topology: tpu7x:2x2x1
jax: 0.10.0
libtpu: 0.0.40
codegen_flags: <defaults>
</compile_context>

<pallas_src>
import functools

import jax
import jax.numpy as jnp
from jax.experimental import pallas as pl
from jax.experimental.pallas import tpu as pltpu


def tc_cnn_kernel(sent_ref, tpool_ref, wbig_ref, wt_ref, b_ref, len_ref,
                  fcw_ref, fcb_ref, out_ref, *, filter_sizes, f_pad):
    """Per-batch program: concat -> conv (fused matmul + shift-add) -> ReLU ->
    masked max-pool -> linear, entirely VMEM-resident."""
    sent = sent_ref[0]                                   # (Sp, Ep) bf16

    # Position-invariant target contribution (+ bias) for all filter sizes:
    # (1, Ep) @ (Ep, n_fs*Fp) -> (1, n_fs*Fp), f32.
    t_contrib = jnp.dot(tpool_ref[0], wt_ref[...],
                        preferred_element_type=jnp.float32) + b_ref[...]

    # ONE fused matmul covering every (filter size, shift):
    # (Sp, Ep) @ (Ep, sum(fs)*Fp) -> (Sp, sum(fs)*Fp), f32 accumulation.
    y = jnp.dot(sent, wbig_ref[...], preferred_element_type=jnp.float32)

    # Shift-add per filter size.  Column slices start at multiples of 128
    # (lane aligned).  Shift i is a roll of rows up by i; wrapped rows land in
    # the masked tail (s >= S - fs + 1), so they never reach the max.
    # jnp.roll (static shift) lowers to slice+concat; pltpu.roll would use the
    # XLU rotate slot — kept jnp.roll for guaranteed jnp semantics.
    accs = []
    col = 0
    for fs in filter_sizes:
        acc = y[:, col:col + f_pad]
        for i in range(1, fs):
            acc = acc + jnp.roll(
                y[:, col + i * f_pad:col + (i + 1) * f_pad], -i, axis=0)
        accs.append(acc)
        col += fs * f_pad

    conv = jnp.maximum(jnp.concatenate(accs, axis=-1) + t_contrib, 0.0)

    # Mask invalid / padded rows out of the max.  0 is a safe fill because the
    # ReLU output at every valid position is >= 0 and every group has >= 1
    # valid row.
    row = jax.lax.broadcasted_iota(jnp.int32, conv.shape, 0)
    conv = jnp.where(row < len_ref[...], conv, 0.0)
    pooled = jnp.max(conv, axis=0, keepdims=True)        # (1, n_fs*Fp) f32

    # dropout: identity at inference.  Final fc, lane-dense (OUTp = 128).
    logits = jnp.dot(pooled.astype(fcw_ref.dtype), fcw_ref[...],
                     preferred_element_type=jnp.float32) + fcb_ref[...]
    out_ref[0] = logits.astype(out_ref.dtype)


def _round_up(x, m):
    return (x + m - 1) // m * m


def tc_cnn_forward(sent, tpool, conv_ws_pt, conv_bs, fc_w_pt, fc_b, filter_sizes):
    """Takes PyTorch-layout parameters, does the lane/sublane-dense re-layout
    and bf16 cast on the host, and runs the batch-gridded Pallas kernel."""
    B, S, E = sent.shape
    n_fs = len(filter_sizes)
    F = conv_ws_pt[0].shape[0]
    OUT = fc_w_pt.shape[0]
    Ep = _round_up(E, 128)
    Fp = _round_up(F, 128)
    Sp = _round_up(S, 8)
    OUTp = _round_up(OUT, 128)
    sum_fs = sum(filter_sizes)

    # Activations: zero-pad K (exact) and S (masked in the pool), cast to bf16.
    sent_p = jnp.pad(sent, ((0, 0), (0, Sp - S), (0, Ep - E))).astype(jnp.bfloat16)
    tpool_p = jnp.pad(tpool, ((0, 0), (0, Ep - E))).reshape(B, 1, Ep).astype(jnp.bfloat16)

    # Conv weights: (F, fs, 2E) -> sentence half per shift concatenated along N
    # for the fused matmul; t_pooled half summed over shifts.
    wbig_blocks, wt_list, b_list, len_list = [], [], [], []
    for w_pt, b, fs in zip(conv_ws_pt, conv_bs, filter_sizes):
        w = jnp.transpose(w_pt, (1, 2, 0))                           # (fs, 2E, F)
        w_sent = jnp.pad(w[:, :E, :], ((0, 0), (0, Ep - E), (0, Fp - F)))
        for i in range(fs):
            wbig_blocks.append(w_sent[i])                            # (Ep, Fp)
        wt_list.append(jnp.pad(jnp.sum(w[:, E:, :], axis=0),
                               ((0, Ep - E), (0, Fp - F))))
        b_list.append(jnp.pad(b, (0, Fp - F)))
        len_list.append(jnp.full((Fp,), S - fs + 1, jnp.int32))
    w_big = jnp.concatenate(wbig_blocks, axis=-1).astype(jnp.bfloat16)   # (Ep, sum_fs*Fp)
    wt_cat = jnp.concatenate(wt_list, axis=-1).astype(jnp.bfloat16)      # (Ep, n_fs*Fp)
    b_cat = jnp.concatenate(b_list).reshape(1, n_fs * Fp).astype(jnp.float32)
    len_cat = jnp.concatenate(len_list).reshape(1, n_fs * Fp)

    # fc: PT Linear (OUT, n_fs*F) -> (n_fs*Fp, OUTp), zero rows/cols for padding.
    fc_w_g = fc_w_pt.T.reshape(n_fs, F, OUT)
    fc_w_k = jnp.pad(fc_w_g, ((0, 0), (0, Fp - F), (0, OUTp - OUT))
                     ).reshape(n_fs * Fp, OUTp).astype(jnp.bfloat16)
    fc_b_k = jnp.pad(fc_b, (0, OUTp - OUT)).reshape(1, OUTp).astype(jnp.float32)

    kernel = functools.partial(tc_cnn_kernel,
                               filter_sizes=tuple(filter_sizes), f_pad=Fp)
    out = pl.pallas_call(
        kernel,
        out_shape=jax.ShapeDtypeStruct((B, 1, OUTp), jnp.float32),
        grid=(B,),
        in_specs=[
            pl.BlockSpec((1, Sp, Ep), lambda b: (b, 0, 0)),          # sent
            pl.BlockSpec((1, 1, Ep), lambda b: (b, 0, 0)),           # t_pooled
            pl.BlockSpec((Ep, sum_fs * Fp), lambda b: (0, 0)),       # w_big
            pl.BlockSpec((Ep, n_fs * Fp), lambda b: (0, 0)),         # wt_cat
            pl.BlockSpec((1, n_fs * Fp), lambda b: (0, 0)),          # b_cat
            pl.BlockSpec((1, n_fs * Fp), lambda b: (0, 0)),          # len_cat
            pl.BlockSpec((n_fs * Fp, OUTp), lambda b: (0, 0)),       # fc_w
            pl.BlockSpec((1, OUTp), lambda b: (0, 0)),               # fc_b
        ],
        out_specs=pl.BlockSpec((1, 1, OUTp), lambda b: (b, 0, 0)),
        compiler_params=pltpu.CompilerParams(
            dimension_semantics=("parallel",),
            vmem_limit_bytes=32 * 1024 * 1024,
        ),
    )(sent_p, tpool_p, w_big, wt_cat, b_cat, len_cat, fc_w_k, fc_b_k)
    return out[:, 0, :OUT]


def reference_forward(sent, tpool, conv_ws_pt, conv_bs, fc_w_pt, fc_b, filter_sizes):
    """Plain-JAX f32 reference mirroring the PyTorch math (PT weight layouts)."""
    B, S, E = sent.shape
    x = jnp.concatenate(
        [sent, jnp.broadcast_to(tpool[:, None, :], (B, S, E))], axis=-1)
    pooled = []
    for w, b, fs in zip(conv_ws_pt, conv_bs, filter_sizes):    # w: (F, fs, 2E)
        L = S - fs + 1
        windows = jnp.stack([x[:, i:i + L, :] for i in range(fs)], axis=2)
        conv = jnp.einsum('blfe,ofe->blo', windows, w) + b[None, None, :]
        conv = jnp.maximum(conv, 0.0)
        pooled.append(conv.max(axis=1))                        # (B, F)
    cat = jnp.concatenate(pooled, axis=-1)
    return cat @ fc_w_pt.T + fc_b[None, :]                     # (B, OUT)


if __name__ == "__main__":
    # Small, forward-consistent shapes (S deliberately not a multiple of 8 to
    # exercise the padding/masking path).
    B, S, E = 2, 15, 32            # batch, seq len, embed_dim
    n_filters = 8
    filter_sizes = (2, 3, 4)
    output_dim = 4

    key = jax.random.PRNGKey(0)
    keys = jax.random.split(key, 2 + 2 * len(filter_sizes) + 2)

    # "BERT" outputs (synthetic, deterministic)
    sent = jax.random.normal(keys[0], (B, S, E), jnp.float32)
    tpool = jax.random.normal(keys[1], (B, E), jnp.float32)

    # Conv2d params, PyTorch layout (F, in=1, fs, 2E) -> squeeze in_channels
    conv_ws_pt, conv_bs = [], []
    for i, fs in enumerate(filter_sizes):
        w = 0.1 * jax.random.normal(keys[2 + 2 * i], (n_filters, fs, 2 * E), jnp.float32)
        b = 0.1 * jax.random.normal(keys[3 + 2 * i], (n_filters,), jnp.float32)
        conv_ws_pt.append(w)
        conv_bs.append(b)

    # Linear params, PyTorch layout (OUT, IN)
    fc_in = len(filter_sizes) * n_filters
    fc_w_pt = 0.1 * jax.random.normal(keys[-2], (output_dim, fc_in), jnp.float32)
    fc_b = 0.1 * jax.random.normal(keys[-1], (output_dim,), jnp.float32)

    logits = tc_cnn_forward(sent, tpool, conv_ws_pt, conv_bs, fc_w_pt, fc_b,
                            filter_sizes)
    logits = jax.block_until_ready(logits)

    ref = reference_forward(sent, tpool, conv_ws_pt, conv_bs, fc_w_pt, fc_b,
                            filter_sizes)
    assert logits.shape == (B, output_dim)
    # bf16 matmul operands (f32 accumulation) -> loosened tolerance vs f32 ref.
    assert jnp.allclose(logits, ref, rtol=5e-2, atol=5e-2), (logits, ref)
    print("KERNEL_OK")
</pallas_src>

<mosaic_0001>
module attributes {stable_mosaic.version = 11 : i64} {
  func.func @tc_cnn_kernel(%arg0: i32, %arg1: memref<1x16x128xbf16, #tpu.memory_space<vmem>>, %arg2: memref<1x1x128xbf16, #tpu.memory_space<vmem>>, %arg3: memref<128x1152xbf16, #tpu.memory_space<vmem>>, %arg4: memref<128x384xbf16, #tpu.memory_space<vmem>>, %arg5: memref<1x384xf32, #tpu.memory_space<vmem>>, %arg6: memref<1x384xi32, #tpu.memory_space<vmem>>, %arg7: memref<384x128xbf16, #tpu.memory_space<vmem>>, %arg8: memref<1x128xf32, #tpu.memory_space<vmem>>, %arg9: memref<1x1x128xf32, #tpu.memory_space<vmem>>) attributes {dimension_semantics = [#tpu.dimension_semantics<parallel>], iteration_bounds = array<i64: 2>, scalar_prefetch = 0 : i64, scratch_operands = 0 : i64, tpu.core_type = #tpu.core_type<tc>, window_params = [{transform_indices = @transform_0, window_bounds = array<i64: 1, 16, 128>}, {transform_indices = @transform_1, window_bounds = array<i64: 1, 1, 128>}, {pipeline_mode = #tpu.pipeline_mode<synchronous>, transform_indices = @transform_2, window_bounds = array<i64: 128, 1152>}, {pipeline_mode = #tpu.pipeline_mode<synchronous>, transform_indices = @transform_3, window_bounds = array<i64: 128, 384>}, {pipeline_mode = #tpu.pipeline_mode<synchronous>, transform_indices = @transform_4, window_bounds = array<i64: 1, 384>}, {pipeline_mode = #tpu.pipeline_mode<synchronous>, transform_indices = @transform_5, window_bounds = array<i64: 1, 384>}, {pipeline_mode = #tpu.pipeline_mode<synchronous>, transform_indices = @transform_6, window_bounds = array<i64: 384, 128>}, {pipeline_mode = #tpu.pipeline_mode<synchronous>, transform_indices = @transform_7, window_bounds = array<i64: 1, 128>}, {transform_indices = @transform_8, window_bounds = array<i64: 1, 1, 128>}]} {
    %c0 = arith.constant 0 : index
    %c0_0 = arith.constant 0 : index
    %c0_1 = arith.constant 0 : index
    %0 = vector.load %arg1[%c0, %c0_0, %c0_1] : memref<1x16x128xbf16, #tpu.memory_space<vmem>>, vector<1x16x128xbf16>
    %1 = vector.shape_cast %0 : vector<1x16x128xbf16> to vector<16x128xbf16>
    %c0_2 = arith.constant 0 : index
    %c0_3 = arith.constant 0 : index
    %c0_4 = arith.constant 0 : index
    %2 = vector.load %arg2[%c0_2, %c0_3, %c0_4] : memref<1x1x128xbf16, #tpu.memory_space<vmem>>, vector<1x1x128xbf16>
    %3 = vector.shape_cast %2 : vector<1x1x128xbf16> to vector<1x128xbf16>
    %c0_5 = arith.constant 0 : index
    %c0_6 = arith.constant 0 : index
    %4 = vector.load %arg4[%c0_5, %c0_6] : memref<128x384xbf16, #tpu.memory_space<vmem>>, vector<128x384xbf16>
    %cst = arith.constant dense<0.000000e+00> : vector<1x384xf32>
    %5 = tpu.matmul %3, %4, %cst {dimension_numbers = #tpu.dot_dimension_numbers<[1], [0], [0], [1], [0, 0, 1, 1], [], []>} : vector<1x128xbf16>, vector<128x384xbf16>, vector<1x384xf32> -> vector<1x384xf32>
    %c0_7 = arith.constant 0 : index
    %c0_8 = arith.constant 0 : index
    %6 = vector.load %arg5[%c0_7, %c0_8] : memref<1x384xf32, #tpu.memory_space<vmem>>, vector<1x384xf32>
    %7 = arith.addf %5, %6 : vector<1x384xf32>
    %c0_9 = arith.constant 0 : index
    %c0_10 = arith.constant 0 : index
    %8 = vector.load %arg3[%c0_9, %c0_10] : memref<128x1152xbf16, #tpu.memory_space<vmem>>, vector<128x1152xbf16>
    %cst_11 = arith.constant dense<0.000000e+00> : vector<16x1152xf32>
    %9 = tpu.matmul %1, %8, %cst_11 {dimension_numbers = #tpu.dot_dimension_numbers<[1], [0], [0], [1], [0, 0, 1, 1], [], []>} : vector<16x128xbf16>, vector<128x1152xbf16>, vector<16x1152xf32> -> vector<16x1152xf32>
    %10 = vector.extract_strided_slice %9 {offsets = [0, 0], sizes = [16, 128], strides = [1, 1]} : vector<16x1152xf32> to vector<16x128xf32>
    %11 = vector.extract_strided_slice %9 {offsets = [0, 128], sizes = [16, 128], strides = [1, 1]} : vector<16x1152xf32> to vector<16x128xf32>
    %12 = vector.extract_strided_slice %11 {offsets = [1, 0], sizes = [15, 128], strides = [1, 1]} : vector<16x128xf32> to vector<15x128xf32>
    %13 = vector.extract_strided_slice %11 {offsets = [0, 0], sizes = [1, 128], strides = [1, 1]} : vector<16x128xf32> to vector<1x128xf32>
    %14 = tpu.concatenate %12, %13 in 0 : vector<15x128xf32>, vector<1x128xf32> -> vector<16x128xf32>
    %15 = arith.addf %10, %14 : vector<16x128xf32>
    %16 = vector.extract_strided_slice %9 {offsets = [0, 256], sizes = [16, 128], strides = [1, 1]} : vector<16x1152xf32> to vector<16x128xf32>
    %17 = vector.extract_strided_slice %9 {offsets = [0, 384], sizes = [16, 128], strides = [1, 1]} : vector<16x1152xf32> to vector<16x128xf32>
    %18 = vector.extract_strided_slice %17 {offsets = [1, 0], sizes = [15, 128], strides = [1, 1]} : vector<16x128xf32> to vector<15x128xf32>
    %19 = vector.extract_strided_slice %17 {offsets = [0, 0], sizes = [1, 128], strides = [1, 1]} : vector<16x128xf32> to vector<1x128xf32>
    %20 = tpu.concatenate %18, %19 in 0 : vector<15x128xf32>, vector<1x128xf32> -> vector<16x128xf32>
    %21 = arith.addf %16, %20 : vector<16x128xf32>
    %22 = vector.extract_strided_slice %9 {offsets = [0, 512], sizes = [16, 128], strides = [1, 1]} : vector<16x1152xf32> to vector<16x128xf32>
    %23 = vector.extract_strided_slice %22 {offsets = [2, 0], sizes = [14, 128], strides = [1, 1]} : vector<16x128xf32> to vector<14x128xf32>
    %24 = vector.extract_strided_slice %22 {offsets = [0, 0], sizes = [2, 128], strides = [1, 1]} : vector<16x128xf32> to vector<2x128xf32>
    %25 = tpu.concatenate %23, %24 in 0 : vector<14x128xf32>, vector<2x128xf32> -> vector<16x128xf32>
    %26 = arith.addf %21, %25 : vector<16x128xf32>
    %27 = vector.extract_strided_slice %9 {offsets = [0, 640], sizes = [16, 128], strides = [1, 1]} : vector<16x1152xf32> to vector<16x128xf32>
    %28 = vector.extract_strided_slice %9 {offsets = [0, 768], sizes = [16, 128], strides = [1, 1]} : vector<16x1152xf32> to vector<16x128xf32>
    %29 = vector.extract_strided_slice %28 {offsets = [1, 0], sizes = [15, 128], strides = [1, 1]} : vector<16x128xf32> to vector<15x128xf32>
    %30 = vector.extract_strided_slice %28 {offsets = [0, 0], sizes = [1, 128], strides = [1, 1]} : vector<16x128xf32> to vector<1x128xf32>
    %31 = tpu.concatenate %29, %30 in 0 : vector<15x128xf32>, vector<1x128xf32> -> vector<16x128xf32>
    %32 = arith.addf %27, %31 : vector<16x128xf32>
    %33 = vector.extract_strided_slice %9 {offsets = [0, 896], sizes = [16, 128], strides = [1, 1]} : vector<16x1152xf32> to vector<16x128xf32>
    %34 = vector.extract_strided_slice %33 {offsets = [2, 0], sizes = [14, 128], strides = [1, 1]} : vector<16x128xf32> to vector<14x128xf32>
    %35 = vector.extract_strided_slice %33 {offsets = [0, 0], sizes = [2, 128], strides = [1, 1]} : vector<16x128xf32> to vector<2x128xf32>
    %36 = tpu.concatenate %34, %35 in 0 : vector<14x128xf32>, vector<2x128xf32> -> vector<16x128xf32>
    %37 = arith.addf %32, %36 : vector<16x128xf32>
    %38 = vector.extract_strided_slice %9 {offsets = [0, 1024], sizes = [16, 128], strides = [1, 1]} : vector<16x1152xf32> to vector<16x128xf32>
    %39 = vector.extract_strided_slice %38 {offsets = [3, 0], sizes = [13, 128], strides = [1, 1]} : vector<16x128xf32> to vector<13x128xf32>
    %40 = vector.extract_strided_slice %38 {offsets = [0, 0], sizes = [3, 128], strides = [1, 1]} : vector<16x128xf32> to vector<3x128xf32>
    %41 = tpu.concatenate %39, %40 in 0 : vector<13x128xf32>, vector<3x128xf32> -> vector<16x128xf32>
    %42 = arith.addf %37, %41 : vector<16x128xf32>
    %43 = tpu.concatenate %15, %26, %42 in 1 : vector<16x128xf32>, vector<16x128xf32>, vector<16x128xf32> -> vector<16x384xf32>
    %44 = vector.broadcast %7 : vector<1x384xf32> to vector<16x384xf32>
    %45 = arith.addf %43, %44 : vector<16x384xf32>
    %cst_12 = arith.constant 0.000000e+00 : f32
    %46 = vector.broadcast %cst_12 : f32 to vector<16x384xf32>
    %47 = arith.maximumf %45, %46 : vector<16x384xf32>
    %48 = tpu.iota {dimensions = array<i32: 0>} : vector<16x384xi32>
    %c0_13 = arith.constant 0 : index
    %c0_14 = arith.constant 0 : index
    %49 = vector.load %arg6[%c0_13, %c0_14] : memref<1x384xi32, #tpu.memory_space<vmem>>, vector<1x384xi32>
    %50 = vector.broadcast %49 : vector<1x384xi32> to vector<16x384xi32>
    %51 = arith.cmpi slt, %48, %50 : vector<16x384xi32>
    %cst_15 = arith.constant 0.000000e+00 : f32
    %52 = vector.broadcast %cst_15 : f32 to vector<16x384xf32>
    %53 = arith.select %51, %47, %52 : vector<16x384xi1>, vector<16x384xf32>
    %cst_16 = arith.constant dense<0xFF800000> : vector<384xf32>
    %54 = vector.multi_reduction <maximumf>, %53, %cst_16 [0] : vector<16x384xf32> to vector<384xf32>
    %55 = vector.shape_cast %54 : vector<384xf32> to vector<1x384xf32>
    %56 = arith.truncf %55 : vector<1x384xf32> to vector<1x384xbf16>
    %c0_17 = arith.constant 0 : index
    %c0_18 = arith.constant 0 : index
    %57 = vector.load %arg7[%c0_17, %c0_18] : memref<384x128xbf16, #tpu.memory_space<vmem>>, vector<384x128xbf16>
    %cst_19 = arith.constant dense<0.000000e+00> : vector<1x128xf32>
    %58 = tpu.matmul %56, %57, %cst_19 {dimension_numbers = #tpu.dot_dimension_numbers<[1], [0], [0], [1], [0, 0, 1, 1], [], []>} : vector<1x384xbf16>, vector<384x128xbf16>, vector<1x128xf32> -> vector<1x128xf32>
    %c0_20 = arith.constant 0 : index
    %c0_21 = arith.constant 0 : index
    %59 = vector.load %arg8[%c0_20, %c0_21] : memref<1x128xf32, #tpu.memory_space<vmem>>, vector<1x128xf32>
    %60 = arith.addf %58, %59 : vector<1x128xf32>
    %c0_22 = arith.constant 0 : index
    %c0_23 = arith.constant 0 : index
    %c0_24 = arith.constant 0 : index
    %61 = vector.load %arg9[%c0_22, %c0_23, %c0_24] : memref<1x1x128xf32, #tpu.memory_space<vmem>>, vector<1x1x128xf32>
    %62 = vector.shape_cast %61 : vector<1x1x128xf32> to vector<1x128xf32>
    %63 = vector.shape_cast %60 : vector<1x128xf32> to vector<1x1x128xf32>
    tpu.vector_store %arg9[%c0_22, %c0_23, %c0_24], %63 {strides = array<i32>} : memref<1x1x128xf32, #tpu.memory_space<vmem>>, vector<1x1x128xf32>,
    return
  }
  func.func @transform_0(%arg0: i32) -> (i32, i32, i32) {
    %c0_i32 = arith.constant 0 : i32
    %c0_i32_0 = arith.constant 0 : i32
    %c0_i32_1 = arith.constant 0 : i32
    return %arg0, %c0_i32, %c0_i32_0 : i32, i32, i32
  }
  func.func @transform_1(%arg0: i32) -> (i32, i32, i32) {
    %c0_i32 = arith.constant 0 : i32
    %c0_i32_0 = arith.constant 0 : i32
    %c0_i32_1 = arith.constant 0 : i32
    return %arg0, %c0_i32, %c0_i32_0 : i32, i32, i32
  }
  func.func @transform_2(%arg0: i32) -> (i32, i32) {
    %c0_i32 = arith.constant 0 : i32
    %c0_i32_0 = arith.constant 0 : i32
    %c0_i32_1 = arith.constant 0 : i32
    return %c0_i32, %c0_i32_0 : i32, i32
  }
  func.func @transform_3(%arg0: i32) -> (i32, i32) {
    %c0_i32 = arith.constant 0 : i32
    %c0_i32_0 = arith.constant 0 : i32
    %c0_i32_1 = arith.constant 0 : i32
    return %c0_i32, %c0_i32_0 : i32, i32
  }
  func.func @transform_4(%arg0: i32) -> (i32, i32) {
    %c0_i32 = arith.constant 0 : i32
    %c0_i32_0 = arith.constant 0 : i32
    %c0_i32_1 = arith.constant 0 : i32
    return %c0_i32, %c0_i32_0 : i32, i32
  }
  func.func @transform_5(%arg0: i32) -> (i32, i32) {
    %c0_i32 = arith.constant 0 : i32
    %c0_i32_0 = arith.constant 0 : i32
    %c0_i32_1 = arith.constant 0 : i32
    return %c0_i32, %c0_i32_0 : i32, i32
  }
  func.func @transform_6(%arg0: i32) -> (i32, i32) {
    %c0_i32 = arith.constant 0 : i32
    %c0_i32_0 = arith.constant 0 : i32
    %c0_i32_1 = arith.constant 0 : i32
    return %c0_i32, %c0_i32_0 : i32, i32
  }
  func.func @transform_7(%arg0: i32) -> (i32, i32) {
    %c0_i32 = arith.constant 0 : i32
    %c0_i32_0 = arith.constant 0 : i32
    %c0_i32_1 = arith.constant 0 : i32
    return %c0_i32, %c0_i32_0 : i32, i32
  }
  func.func @transform_8(%arg0: i32) -> (i32, i32, i32) {
    %c0_i32 = arith.constant 0 : i32
    %c0_i32_0 = arith.constant 0 : i32
    %c0_i32_1 = arith.constant 0 : i32
    return %arg0, %c0_i32, %c0_i32_0 : i32, i32, i32
  }
}

</mosaic_0001>

<llo_original>
// kernel: tpu_custom_call.1
$region0: #{tpu_custom_call.1}
  #allocation0 [shape = 'u32[]', space=smem, size = 0x4, offset = 0x4, fixed_abs, tag = 'smem constant byte address 0x4 - core index']
  #allocation1 [shape = 'u32[144,128]{1,0:T(1,128)}', space=vmem, size = 0x12000, scoped, tag = 'internal scratch']
  %s0 = inlined_call_operand.hbm [shape: bf16[2,16,128], index: 0, kind: input, shape index: {}]
  %s1 = inlined_call_operand.vmem [shape: bf16[2,1,128], index: 1, kind: input, shape index: {}]
  %s2 = inlined_call_operand.hbm [shape: bf16[128,1152], index: 2, kind: input, shape index: {}]
  %s3 = inlined_call_operand.hbm [shape: bf16[128,384], index: 3, kind: input, shape index: {}]
  %s4 = inlined_call_operand.vmem [shape: f32[1,384], index: 4, kind: input, shape index: {}]
  %s5 = inlined_call_operand.vmem [shape: s32[1,384], index: 5, kind: input, shape index: {}]
  %s6 = inlined_call_operand.hbm [shape: bf16[384,128], index: 6, kind: input, shape index: {}]
  %s7 = inlined_call_operand.vmem [shape: f32[1,128], index: 7, kind: input, shape index: {}]
  %s8 = inlined_call_operand.hbm [shape: f32[2,1,128], index: 8, kind: output, shape index: {}]
  %s9 = sld [smem:[#allocation0]]
  $region81: #{tpu_custom_call.1} parent=0
    _
  %s11 = ssub.s32 1, %s9
  %s12 = scalar_select 0, %s11, %s9
  $region1: #{tpu_custom_call.1} parent=0
    #allocation2 [shape = 'u8[8192]{0}', space=vmem, size = 0x2000, scoped, tag = 'input window, operand 0']
    #allocation3 [shape = 's32[2]{0}', space=sflag, size = 0x8, scoped, tag = 'scoped memory for tpu_custom_call.1']
    #allocation4 [shape = 's32[2]{0}', space=sflag, size = 0x8, scoped, tag = 'scoped memory for tpu_custom_call.1']
    #allocation5 [shape = 'u8[294912]{0}', space=vmem, size = 0x48000, scoped, tag = 'input window, operand 2, single buffered']
    #allocation6 [shape = 's32[1]{0}', space=sflag, size = 0x4, scoped, tag = 'scoped memory for tpu_custom_call.1']
    #allocation7 [shape = 'u8[98304]{0}', space=vmem, size = 0x18000, scoped, tag = 'input window, operand 3, single buffered']
    #allocation8 [shape = 'u8[98304]{0}', space=vmem, size = 0x18000, scoped, tag = 'input window, operand 6, single buffered']
    #allocation9 [shape = 's32[1]{0}', space=sflag, size = 0x4, scoped, tag = 'scoped memory for tpu_custom_call.1']
    #allocation10 [shape = 'u8[1024]{0}', space=vmem, size = 0x400, scoped, tag = 'output window, operand 0']
    %13 = vsyncpa [#allocation3], 0
    %s14 = scalar_lea.sflag [#allocation3], 1
    %15 = vsyncpa %s14, 0
    %16 = vsyncpa [#allocation6], 0
    %17 = vsyncpa [#allocation9], 0
    %18 = vsyncpa [#allocation4], 0
    %s19 = scalar_lea.sflag [#allocation4], 1
    %20 = vsyncpa %s19, 0
    loop: start=0, step=1, limit=4
    $region2: #{tpu_custom_call.1} parent=1 // loop_pre_header
      _
    $region3: #{tpu_custom_call.1} parent=1 // loop_header
      %s22 = sphi 0, %s26
      %p23 = scmp.ge.s32.totalorder %s22, 4
      %s32 = sphi 0, %s34
      %s35 = sphi 0, %s32
      %s36 = sphi 0, %s35
      %s52 = sphi 0, %s36
      %s58 = sphi 0, %s60
      %s61 = sphi 0, %s58
      %s62 = sphi 0, %s61
      %s78 = sphi 0, %s62
      %s82 = sphi 0, %s82
      %s84 = sphi 0, %s82
      %s85 = sphi 0, %s84
      %s99 = sphi 0, %s85
      %s103 = sphi 0, %s103
      %s105 = sphi 0, %s103
      %s106 = sphi 0, %s105
      %s120 = sphi 0, %s106
      %s124 = sphi 0, %s124
      %s126 = sphi 0, %s124
      %s127 = sphi 0, %s126
      %s141 = sphi 0, %s127
      %s145 = sphi 0, %s145
      %s147 = sphi 0, %s145
      %s148 = sphi 0, %s147
      %s162 = sphi 0, %s148
      %s166 = sphi 0, %s166
      %s168 = sphi 0, %s166
      %s169 = sphi 0, %s168
      %s183 = sphi 0, %s169
      %s187 = sphi 0, %s187
      %s189 = sphi 0, %s187
      %s190 = sphi 0, %s189
      %s204 = sphi 0, %s190
      %s210 = sphi 0, %s212
      %s213 = sphi 0, %s210
      %s214 = sphi 0, %s213
      %s230 = sphi 0, %s214
    $region4: #{tpu_custom_call.1} parent=1 // loop_header_branch
      %25 = sbr.rel (%p23) target = $region8
    $region5: #{tpu_custom_call.1} parent=1 // loop_body
      %s27 = ssub.s32 %s22, 1
      %s28 = ssub.s32 %s22, 2
      %s29 = sadd.s32 %s22, 1
      %s30 = ssub.s32 %s22, %s29
      %p31 = scmp.eq.s32.totalorder %s30, 0
      %s33 = sadd.s32 %s32, 1
      %s34 = scalar_select %p31, %s32, %s33
      %p37 = pneg %p31
      %p38 = scmp.eq.s32.totalorder %s22, 1
      %p39 = por %p37, %p38
      %p40 = scmp.ne.s32.totalorder %s32, %s35
      %p41 = scmp.eq.s32.totalorder %s22, 0
      %p42 = por %p40, %p41
      %p43 = scmp.ne.s32.totalorder %s32, %s35
      %p44 = scmp.eq.s32.totalorder %s27, 1
      %p45 = por %p43, %p44
      %p46 = scmp.ne.s32.totalorder %s35, %s36
      %p47 = scmp.eq.s32.totalorder %s27, 0
      %p48 = por %p46, %p47
      %p49 = scmp.ne.s32.totalorder %s35, %s36
      %p50 = scmp.eq.s32.totalorder %s28, 1
      %p51 = por %p49, %p50
      %p53 = scmp.ne.s32.totalorder %s36, %s52
      %p54 = scmp.eq.s32.totalorder %s28, 0
      %p55 = por %p53, %p54
      %s56 = ssub.s32 %s22, %s29
      %p57 = scmp.eq.s32.totalorder %s56, 0
      %s59 = sadd.s32 %s58, 1
      %s60 = scalar_select %p57, %s58, %s59
      %p63 = pneg %p57
      %p64 = scmp.eq.s32.totalorder %s22, 1
      %p65 = por %p63, %p64
      %p66 = scmp.ne.s32.totalorder %s58, %s61
      %p67 = scmp.eq.s32.totalorder %s22, 0
      %p68 = por %p66, %p67
      %p69 = scmp.ne.s32.totalorder %s58, %s61
      %p70 = scmp.eq.s32.totalorder %s27, 1
      %p71 = por %p69, %p70
      %p72 = scmp.ne.s32.totalorder %s61, %s62
      %p73 = scmp.eq.s32.totalorder %s27, 0
      %p74 = por %p72, %p73
      %p75 = scmp.ne.s32.totalorder %s61, %s62
      %p76 = scmp.eq.s32.totalorder %s28, 1
      %p77 = por %p75, %p76
      %p79 = scmp.ne.s32.totalorder %s62, %s78
      %p80 = scmp.eq.s32.totalorder %s28, 0
      %p81 = por %p79, %p80
      %s83 = sadd.s32 %s82, 1
      %p86 = scmp.eq.s32.totalorder %s22, 1
      %p87 = scmp.ne.s32.totalorder %s82, %s84
      %p88 = scmp.eq.s32.totalorder %s22, 0
      %p89 = por %p87, %p88
      %p90 = scmp.ne.s32.totalorder %s82, %s84
      %p91 = scmp.eq.s32.totalorder %s27, 1
      %p92 = por %p90, %p91
      %p93 = scmp.ne.s32.totalorder %s84, %s85
      %p94 = scmp.eq.s32.totalorder %s27, 0
      %p95 = por %p93, %p94
      %p96 = scmp.ne.s32.totalorder %s84, %s85
      %p97 = scmp.eq.s32.totalorder %s28, 1
      %p98 = por %p96, %p97
      %p100 = scmp.ne.s32.totalorder %s85, %s99
      %p101 = scmp.eq.s32.totalorder %s28, 0
      %p102 = por %p100, %p101
      %s104 = sadd.s32 %s103, 1
      %p107 = scmp.eq.s32.totalorder %s22, 1
      %p108 = scmp.ne.s32.totalorder %s103, %s105
      %p109 = scmp.eq.s32.totalorder %s22, 0
      %p110 = por %p108, %p109
      %p111 = scmp.ne.s32.totalorder %s103, %s105
      %p112 = scmp.eq.s32.totalorder %s27, 1
      %p113 = por %p111, %p112
      %p114 = scmp.ne.s32.totalorder %s105, %s106
      %p115 = scmp.eq.s32.totalorder %s27, 0
      %p116 = por %p114, %p115
      %p117 = scmp.ne.s32.totalorder %s105, %s106
      %p118 = scmp.eq.s32.totalorder %s28, 1
      %p119 = por %p117, %p118
      %p121 = scmp.ne.s32.totalorder %s106, %s120
      %p122 = scmp.eq.s32.totalorder %s28, 0
      %p123 = por %p121, %p122
      %s125 = sadd.s32 %s124, 1
      %p128 = scmp.eq.s32.totalorder %s22, 1
      %p129 = scmp.ne.s32.totalorder %s124, %s126
      %p130 = scmp.eq.s32.totalorder %s22, 0
      %p131 = por %p129, %p130
      %p132 = scmp.ne.s32.totalorder %s124, %s126
      %p133 = scmp.eq.s32.totalorder %s27, 1
      %p134 = por %p132, %p133
      %p135 = scmp.ne.s32.totalorder %s126, %s127
      %p136 = scmp.eq.s32.totalorder %s27, 0
      %p137 = por %p135, %p136
      %p138 = scmp.ne.s32.totalorder %s126, %s127
      %p139 = scmp.eq.s32.totalorder %s28, 1
      %p140 = por %p138, %p139
      %p142 = scmp.ne.s32.totalorder %s127, %s141
      %p143 = scmp.eq.s32.totalorder %s28, 0
      %p144 = por %p142, %p143
      %s146 = sadd.s32 %s145, 1
      %p149 = scmp.eq.s32.totalorder %s22, 1
      %p150 = scmp.ne.s32.totalorder %s145, %s147
      %p151 = scmp.eq.s32.totalorder %s22, 0
      %p152 = por %p150, %p151
      %p153 = scmp.ne.s32.totalorder %s145, %s147
      %p154 = scmp.eq.s32.totalorder %s27, 1
      %p155 = por %p153, %p154
      %p156 = scmp.ne.s32.totalorder %s147, %s148
      %p157 = scmp.eq.s32.totalorder %s27, 0
      %p158 = por %p156, %p157
      %p159 = scmp.ne.s32.totalorder %s147, %s148
      %p160 = scmp.eq.s32.totalorder %s28, 1
      %p161 = por %p159, %p160
      %p163 = scmp.ne.s32.totalorder %s148, %s162
      %p164 = scmp.eq.s32.totalorder %s28, 0
      %p165 = por %p163, %p164
      %s167 = sadd.s32 %s166, 1
      %p170 = scmp.eq.s32.totalorder %s22, 1
      %p171 = scmp.ne.s32.totalorder %s166, %s168
      %p172 = scmp.eq.s32.totalorder %s22, 0
      %p173 = por %p171, %p172
      %p174 = scmp.ne.s32.totalorder %s166, %s168
      %p175 = scmp.eq.s32.totalorder %s27, 1
      %p176 = por %p174, %p175
      %p177 = scmp.ne.s32.totalorder %s168, %s169
      %p178 = scmp.eq.s32.totalorder %s27, 0
      %p179 = por %p177, %p178
      %p180 = scmp.ne.s32.totalorder %s168, %s169
      %p181 = scmp.eq.s32.totalorder %s28, 1
      %p182 = por %p180, %p181
      %p184 = scmp.ne.s32.totalorder %s169, %s183
      %p185 = scmp.eq.s32.totalorder %s28, 0
      %p186 = por %p184, %p185
      %s188 = sadd.s32 %s187, 1
      %p191 = scmp.eq.s32.totalorder %s22, 1
      %p192 = scmp.ne.s32.totalorder %s187, %s189
      %p193 = scmp.eq.s32.totalorder %s22, 0
      %p194 = por %p192, %p193
      %p195 = scmp.ne.s32.totalorder %s187, %s189
      %p196 = scmp.eq.s32.totalorder %s27, 1
      %p197 = por %p195, %p196
      %p198 = scmp.ne.s32.totalorder %s189, %s190
      %p199 = scmp.eq.s32.totalorder %s27, 0
      %p200 = por %p198, %p199
      %p201 = scmp.ne.s32.totalorder %s189, %s190
      %p202 = scmp.eq.s32.totalorder %s28, 1
      %p203 = por %p201, %p202
      %p205 = scmp.ne.s32.totalorder %s190, %s204
      %p206 = scmp.eq.s32.totalorder %s28, 0
      %p207 = por %p205, %p206
      %s208 = ssub.s32 %s22, %s29
      %p209 = scmp.eq.s32.totalorder %s208, 0
      %s211 = sadd.s32 %s210, 1
      %s212 = scalar_select %p209, %s210, %s211
      %p215 = pneg %p209
      %p216 = scmp.eq.s32.totalorder %s22, 1
      %p217 = por %p215, %p216
      %p218 = scmp.ne.s32.totalorder %s210, %s213
      %p219 = scmp.eq.s32.totalorder %s22, 0
      %p220 = por %p218, %p219
      %p221 = scmp.ne.s32.totalorder %s210, %s213
      %p222 = scmp.eq.s32.totalorder %s27, 1
      %p223 = por %p221, %p222
      %p224 = scmp.ne.s32.totalorder %s213, %s214
      %p225 = scmp.eq.s32.totalorder %s27, 0
      %p226 = por %p224, %p225
      %p227 = scmp.ne.s32.totalorder %s213, %s214
      %p228 = scmp.eq.s32.totalorder %s28, 1
      %p229 = por %p227, %p228
      %p231 = scmp.ne.s32.totalorder %s214, %s230
      %p232 = scmp.eq.s32.totalorder %s28, 0
      %p233 = por %p231, %p232
      %p234 = scmp.le.s32.totalorder 1, %s22
      %p235 = scmp.lt.s32.totalorder %s22, 3
      %p236 = pnand %p234, %p235
      %p237 = pneg %p236
      // Predicated region
      $region9: #{tpu_custom_call.1} parent=5 // pred_check
        _
      $region10: #{tpu_custom_call.1} parent=5 // pred_check_branch
        %239 = sbr.rel (%p236) target = $region12
      $region11: #{tpu_custom_call.1} parent=5 // pred_region
        %s240 = ssub.s32 %s22, 1
        // Predicated region
        $region13: #{tpu_custom_call.1} parent=11 // pred_check
          %p241 = pneg %p95
        $region14: #{tpu_custom_call.1} parent=11 // pred_check_branch
          %243 = sbr.rel (%p241) target = $region16
        $region15: #{tpu_custom_call.1} parent=11 // pred_region
          %s245 = ssub.s32 9216, 9216
          %246 = vsyncadd [#allocation6], %s245
          %s247 = sshll.u32 [#allocation5], 4
          %s248 = int_to_ptr.vmem [resolvable:$true] %s247
          %253 = dma.hbm_to_vmem [thread:$0]  %s2, 9216, %s248, [#allocation6], 576, 576, 36
        $region16: #{tpu_custom_call.1} parent=11 // pred_fallthru
          _
        // Predicated region
        $region17: #{tpu_custom_call.1} parent=11 // pred_check
          %p254 = pneg %p116
        $region18: #{tpu_custom_call.1} parent=11 // pred_check_branch
          %256 = sbr.rel (%p254) target = $region20
        $region19: #{tpu_custom_call.1} parent=11 // pred_region
          %s258 = ssub.s32 3072, 3072
          %259 = vsyncadd [#allocation6], %s258
          %s260 = sshll.u32 [#allocation7], 4
          %s261 = int_to_ptr.vmem [resolvable:$true] %s260
          %266 = dma.hbm_to_vmem [thread:$0]  %s3, 3072, %s261, [#allocation6], 192, 192, 12
        $region20: #{tpu_custom_call.1} parent=11 // pred_fallthru
          _
        // Predicated region
        $region21: #{tpu_custom_call.1} parent=11 // pred_check
          %p267 = pneg %p137
        $region22: #{tpu_custom_call.1} parent=11 // pred_check_branch
          %269 = sbr.rel (%p267) target = $region24
        $region23: #{tpu_custom_call.1} parent=11 // pred_region
          _
        $region24: #{tpu_custom_call.1} parent=11 // pred_fallthru
          _
        // Predicated region
        $region25: #{tpu_custom_call.1} parent=11 // pred_check
          %p270 = pneg %p158
        $region26: #{tpu_custom_call.1} parent=11 // pred_check_branch
          %272 = sbr.rel (%p270) target = $region28
        $region27: #{tpu_custom_call.1} parent=11 // pred_region
          _
        $region28: #{tpu_custom_call.1} parent=11 // pred_fallthru
          _
        // Predicated region
        $region29: #{tpu_custom_call.1} parent=11 // pred_check
          %p273 = pneg %p179
        $region30: #{tpu_custom_call.1} parent=11 // pred_check_branch
          %275 = sbr.rel (%p273) target = $region32
        $region31: #{tpu_custom_call.1} parent=11 // pred_region
          %s277 = ssub.s32 3072, 3072
          %278 = vsyncadd [#allocation9], %s277
          %s279 = sshll.u32 [#allocation8], 4
          %s280 = int_to_ptr.vmem [resolvable:$true] %s279
          %285 = dma.hbm_to_vmem [thread:$0]  %s6, 3072, %s280, [#allocation9], 64, 64, 4
        $region32: #{tpu_custom_call.1} parent=11 // pred_fallthru
          _
        // Predicated region
        $region33: #{tpu_custom_call.1} parent=11 // pred_check
          %p286 = pneg %p200
        $region34: #{tpu_custom_call.1} parent=11 // pred_check_branch
          %288 = sbr.rel (%p286) target = $region36
        $region35: #{tpu_custom_call.1} parent=11 // pred_region
          _
        $region36: #{tpu_custom_call.1} parent=11 // pred_fallthru
          _
      $region12: #{tpu_custom_call.1} parent=5 // pred_fallthru
        _
      %p289 = scmp.lt.s32.totalorder %s22, 2
      // Predicated region
      $region37: #{tpu_custom_call.1} parent=5 // pred_check
        %p290 = pneg %p289
      $region38: #{tpu_custom_call.1} parent=5 // pred_check_branch
        %292 = sbr.rel (%p290) target = $region40
      $region39: #{tpu_custom_call.1} parent=5 // pred_region
        // Predicated region
        $region41: #{tpu_custom_call.1} parent=39 // pred_check
          %p293 = pneg %p42
        $region42: #{tpu_custom_call.1} parent=39 // pred_check_branch
          %295 = sbr.rel (%p293) target = $region44
        $region43: #{tpu_custom_call.1} parent=39 // pred_region
          %s296 = sand.u32 %s32, 1
          %s297 = scalar_lea.sflag [#allocation3], %s296
          %s298 = sand.u32 %s32, 1
          %s299 = smul.addr %s298, 8
          %s300 = scalar_lea.vmem [#allocation2], %s299
          %s302 = ssub.s32 128, 128
          %303 = vsyncadd %s297, %s302
          %s304 = smul.addr %s22, 2
          %s305 = smul.addr %s304, 64
          %s306 = scalar_lea.hbm %s0, %s305
          %s307 = sshll.u32 %s300, 4
          %s308 = int_to_ptr.vmem [resolvable:$true] %s307
          %313 = dma.hbm_to_vmem [thread:$0]  %s306, 128, %s308, %s297, 64, 64, 4
        $region44: #{tpu_custom_call.1} parent=39 // pred_fallthru
          _
        // Predicated region
        $region45: #{tpu_custom_call.1} parent=39 // pred_check
          %p314 = pneg %p68
        $region46: #{tpu_custom_call.1} parent=39 // pred_check_branch
          %316 = sbr.rel (%p314) target = $region48
        $region47: #{tpu_custom_call.1} parent=39 // pred_region
          %p317 = scmp.lt.s32.totalorder %s22, 1
          %s318 = scalar_select %p317, %s22, 1
          %s319 = scalar_lea.vmem %s1, %s318
        $region48: #{tpu_custom_call.1} parent=39 // pred_fallthru
          _
      $region40: #{tpu_custom_call.1} parent=5 // pred_fallthru
        _
      %p320 = scmp.le.s32.totalorder 1, %s22
      %p321 = scmp.lt.s32.totalorder %s22, 3
      %p322 = pnand %p320, %p321
      %p323 = pneg %p322
      // Predicated region
      $region49: #{tpu_custom_call.1} parent=5 // pred_check
        _
      $region50: #{tpu_custom_call.1} parent=5 // pred_check_branch
        %325 = sbr.rel (%p322) target = $region52
      $region51: #{tpu_custom_call.1} parent=5 // pred_region
        %s326 = ssub.s32 %s22, 1
        %s327 = sand.u32 %s35, 1
        %s328 = scalar_lea.sflag [#allocation3], %s327
        %s329 = sand.u32 %s35, 1
        %s330 = smul.addr %s329, 8
        %s331 = scalar_lea.vmem [#allocation2], %s330
        // Predicated region
        $region53: #{tpu_custom_call.1} parent=51 // pred_check
          %p332 = pneg %p48
        $region54: #{tpu_custom_call.1} parent=51 // pred_check_branch
          %334 = sbr.rel (%p332) target = $region56
        $region55: #{tpu_custom_call.1} parent=51 // pred_region
          %335 = dma.done %s328, 128
        $region56: #{tpu_custom_call.1} parent=51 // pred_fallthru
          _
        // Predicated region
        $region57: #{tpu_custom_call.1} parent=51 // pred_check
          %p336 = pneg %p95
        $region58: #{tpu_custom_call.1} parent=51 // pred_check_branch
          %338 = sbr.rel (%p336) target = $region60
        $region59: #{tpu_custom_call.1} parent=51 // pred_region
          %339 = dma.done [#allocation6], 9216
        $region60: #{tpu_custom_call.1} parent=51 // pred_fallthru
          _
        // Predicated region
        $region61: #{tpu_custom_call.1} parent=51 // pred_check
          %p340 = pneg %p116
        $region62: #{tpu_custom_call.1} parent=51 // pred_check_branch
          %342 = sbr.rel (%p340) target = $region64
        $region63: #{tpu_custom_call.1} parent=51 // pred_region
          %343 = dma.done [#allocation6], 3072
        $region64: #{tpu_custom_call.1} parent=51 // pred_fallthru
          _
        // Predicated region
        $region65: #{tpu_custom_call.1} parent=51 // pred_check
          %p344 = pneg %p179
        $region66: #{tpu_custom_call.1} parent=51 // pred_check_branch
          %346 = sbr.rel (%p344) target = $region68
        $region67: #{tpu_custom_call.1} parent=51 // pred_region
          %347 = dma.done [#allocation9], 3072
        $region68: #{tpu_custom_call.1} parent=51 // pred_fallthru
          _
        %s348 = sand.u32 %s35, 1
        %s349 = scalar_lea.sflag [#allocation3], %s348
        %s350 = sand.u32 %s35, 1
        %s351 = smul.addr %s350, 8
        %s352 = scalar_lea.vmem [#allocation2], %s351
        %p353 = pneg %p48
        %p354 = pneg %p45
        %p355 = scmp.lt.s32.totalorder %s27, 1
        %s356 = scalar_select %p355, %s27, 1
        %s357 = scalar_lea.vmem %s1, %s356
        %p358 = pneg %p74
        %p359 = pneg %p71
        %p360 = pneg %p95
        %p361 = pneg %p92
        %p362 = pneg %p116
        %p363 = pneg %p113
        %p364 = pneg %p137
        %p365 = pneg %p134
        %p366 = pneg %p158
        %p367 = pneg %p155
        %p368 = pneg %p179
        %p369 = pneg %p176
        %p370 = pneg %p200
        %p371 = pneg %p197
        %p372 = pneg %p226
        %p373 = pneg %p223
        %s374 = sand.u32 %s213, 1
        %s375 = scalar_lea.sflag [#allocation4], %s374
        %s376 = sand.u32 %s213, 1
        %s377 = scalar_lea.vmem [#allocation10], %s376
        %p378 = scmp.lt.s32.totalorder %s27, 1
        %s379 = scalar_select %p378, %s27, 1
        %s380 = scalar_lea.vmem %s1, %s379
        %v382 = vld [vmem:[%s331] sm:$0xf]
        %v383 = vld [vmem:[%s331 + $0x4] sm:$0xf]
        %v384 = vld [vmem:[%s380] sm:$0x1]
        %v385 = vld [vmem:[#allocation7] sm:$0xff]
        %v386 = vld [vmem:[#allocation7 + $0x8] sm:$0xf]
        %v387 = vld [vmem:[#allocation7 + $0xc] sm:$0xff]
        %v388 = vld [vmem:[#allocation7 + $0x14] sm:$0xf]
        %v389 = vld [vmem:[#allocation7 + $0x18] sm:$0xff]
        %v390 = vld [vmem:[#allocation7 + $0x20] sm:$0xf]
        %v391 = vld [vmem:[#allocation7 + $0x24] sm:$0xff]
        %v392 = vld [vmem:[#allocation7 + $0x2c] sm:$0xf]
        %v393 = vld [vmem:[#allocation7 + $0x30] sm:$0xff]
        %v394 = vld [vmem:[#allocation7 + $0x38] sm:$0xf]
        %v395 = vld [vmem:[#allocation7 + $0x3c] sm:$0xff]
        %v396 = vld [vmem:[#allocation7 + $0x44] sm:$0xf]
        %v397 = vld [vmem:[#allocation7 + $0x48] sm:$0xff]
        %v398 = vld [vmem:[#allocation7 + $0x50] sm:$0xf]
        %v399 = vld [vmem:[#allocation7 + $0x54] sm:$0xff]
        %v400 = vld [vmem:[#allocation7 + $0x5c] sm:$0xf]
        %v401 = vld [vmem:[#allocation7 + $0x60] sm:$0xff]
        %v402 = vld [vmem:[#allocation7 + $0x68] sm:$0xf]
        %v403 = vld [vmem:[#allocation7 + $0x6c] sm:$0xff]
        %v404 = vld [vmem:[#allocation7 + $0x74] sm:$0xf]
        %v405 = vld [vmem:[#allocation7 + $0x78] sm:$0xff]
        %v406 = vld [vmem:[#allocation7 + $0x80] sm:$0xf]
        %v407 = vld [vmem:[#allocation7 + $0x84] sm:$0xff]
        %v408 = vld [vmem:[#allocation7 + $0x8c] sm:$0xf]
        %v409 = vld [vmem:[#allocation7 + $0x90] sm:$0xff]
        %v410 = vld [vmem:[#allocation7 + $0x98] sm:$0xf]
        %v411 = vld [vmem:[#allocation7 + $0x9c] sm:$0xff]
        %v412 = vld [vmem:[#allocation7 + $0xa4] sm:$0xf]
        %v413 = vld [vmem:[#allocation7 + $0xa8] sm:$0xff]
        %v414 = vld [vmem:[#allocation7 + $0xb0] sm:$0xf]
        %v415 = vld [vmem:[#allocation7 + $0xb4] sm:$0xff]
        %v416 = vld [vmem:[#allocation7 + $0xbc] sm:$0xf]
        %v417 = vld [vmem:[%s4] sm:$0x7]
        %v450 = vunpack.c.l.b16 %v385
        %v451 = vunpack.c.h.b16 %v385
        %v452 = vunpack.c.l.b16 %v386
        %v453 = vunpack.c.l.b16 %v387
        %v454 = vunpack.c.h.b16 %v387
        %v455 = vunpack.c.l.b16 %v388
        %v456 = vunpack.c.l.b16 %v389
        %v457 = vunpack.c.h.b16 %v389
        %v458 = vunpack.c.l.b16 %v390
        %v459 = vunpack.c.l.b16 %v391
        %v460 = vunpack.c.h.b16 %v391
        %v461 = vunpack.c.l.b16 %v392
        %v462 = vunpack.c.l.b16 %v393
        %v463 = vunpack.c.h.b16 %v393
        %v464 = vunpack.c.l.b16 %v394
        %v465 = vunpack.c.l.b16 %v395
        %v466 = vunpack.c.h.b16 %v395
        %v467 = vunpack.c.l.b16 %v396
        %v468 = vunpack.c.l.b16 %v397
        %v469 = vunpack.c.h.b16 %v397
        %v470 = vunpack.c.l.b16 %v398
        %v471 = vunpack.c.l.b16 %v399
        %v472 = vunpack.c.h.b16 %v399
        %v473 = vunpack.c.l.b16 %v400
        %v474 = vunpack.c.l.b16 %v401
        %v475 = vunpack.c.h.b16 %v401
        %v476 = vunpack.c.l.b16 %v402
        %v477 = vunpack.c.l.b16 %v403
        %v478 = vunpack.c.h.b16 %v403
        %v479 = vunpack.c.l.b16 %v404
        %v480 = vunpack.c.l.b16 %v405
        %v481 = vunpack.c.h.b16 %v405
        %v482 = vunpack.c.l.b16 %v406
        %v483 = vunpack.c.l.b16 %v407
        %v484 = vunpack.c.h.b16 %v407
        %v485 = vunpack.c.l.b16 %v408
        %v486 = vunpack.c.l.b16 %v409
        %v487 = vunpack.c.h.b16 %v409
        %v488 = vunpack.c.l.b16 %v410
        %v489 = vunpack.c.l.b16 %v411
        %v490 = vunpack.c.h.b16 %v411
        %v491 = vunpack.c.l.b16 %v412
        %v492 = vunpack.c.l.b16 %v413
        %v493 = vunpack.c.h.b16 %v413
        %v494 = vunpack.c.l.b16 %v414
        %v495 = vunpack.c.l.b16 %v415
        %v496 = vunpack.c.h.b16 %v415
        %v497 = vunpack.c.l.b16 %v416
        %v498 = vpack.c.b16 %v453, %v450
        %v499 = vpack.c.b16 %v454, %v451
        %v500 = vpack.c.b16 %v455, %v452
        %v501 = vpack.c.b16 %v459, %v456
        %v502 = vpack.c.b16 %v460, %v457
        %v503 = vpack.c.b16 %v461, %v458
        %v504 = vpack.c.b16 %v465, %v462
        %v505 = vpack.c.b16 %v466, %v463
        %v506 = vpack.c.b16 %v467, %v464
        %v507 = vpack.c.b16 %v471, %v468
        %v508 = vpack.c.b16 %v472, %v469
        %v509 = vpack.c.b16 %v473, %v470
        %v510 = vpack.c.b16 %v477, %v474
        %v511 = vpack.c.b16 %v478, %v475
        %v512 = vpack.c.b16 %v479, %v476
        %v513 = vpack.c.b16 %v483, %v480
        %v514 = vpack.c.b16 %v484, %v481
        %v515 = vpack.c.b16 %v485, %v482
        %v516 = vpack.c.b16 %v489, %v486
        %v517 = vpack.c.b16 %v490, %v487
        %v518 = vpack.c.b16 %v491, %v488
        %v519 = vpack.c.b16 %v495, %v492
        %v520 = vpack.c.b16 %v496, %v493
        %v521 = vpack.c.b16 %v497, %v494
        %v547 = vlaneseq
        %v548 = vshrl.u32 %v547, 7
        %v549 = vsub.s32 0, %v548
        %v550 = vrot.slane %v417, %v549
        %v551 = vlaneseq
        %v552 = vshrl.u32 %v551, 7
        %v553 = vsub.s32 1, %v552
        %v554 = vrot.slane %v417, %v553
        %v555 = vlaneseq
        %v556 = vshrl.u32 %v555, 7
        %v557 = vsub.s32 2, %v556
        %v558 = vrot.slane %v417, %v557
        %562 = vmatprep.subr.bf16.mxu0 %v499
        %563 = vmatpush1.bf16.msra.mxu0 %v498
        %564 = vmatprep.subr.bf16.mxu0 %v502
        %565 = vmatpush1.bf16.msra.mxu0 %v501
        %566 = vmatprep.subr.bf16.mxu0 %v505
        %567 = vmatpush1.bf16.msra.mxu0 %v504
        %568 = vmatprep.subr.bf16.mxu0 %v508
        %569 = vmatpush1.bf16.msra.mxu0 %v507
        %570 = vmatprep.subr.bf16.mxu0 %v511
        %571 = vmatpush1.bf16.msra.mxu0 %v510
        %572 = vmatprep.subr.bf16.mxu0 %v514
        %573 = vmatpush1.bf16.msra.mxu0 %v513
        %574 = vmatprep.subr.bf16.mxu0 %v517
        %575 = vmatpush1.bf16.msra.mxu0 %v516
        %576 = vmatprep.subr.bf16.mxu0 %v520
        %577 = vmatpush1.bf16.msra.mxu0 %v519
        %578 = vmatprep.subr.bf16.mxu0 0
        %579 = vmatpush1.bf16.msra.mxu0 0
        %580 = vmatprep.subr.bf16.mxu0 0
        %581 = vmatpush1.bf16.msra.mxu0 0
        %582 = vmatprep.subr.bf16.mxu0 0
        %583 = vmatpush1.bf16.msra.mxu0 0
        %584 = vmatprep.subr.bf16.mxu0 0
        %585 = vmatpush1.bf16.msra.mxu0 0
        %586 = vmatprep.subr.bf16.mxu0 0
        %587 = vmatpush1.bf16.msra.mxu0 0
        %588 = vmatprep.subr.bf16.mxu0 0
        %589 = vmatpush1.bf16.msra.mxu0 0
        %590 = vmatprep.subr.bf16.mxu0 0
        %591 = vmatpush1.bf16.msra.mxu0 0
        %592 = vmatprep.subr.bf16.mxu0 0
        %593 = vmatpush1.bf16.msra.mxu0 0
        %594 = vmatprep.mubr.bf16.mxu0 0
        %595 = vmatmul.mubr.bf16.gmra.mrb[0].mxu0 %v384
        %v596 = vpop.f32.mrb[0].mxu0
        %v597 = vadd.f32 %v550, %v596
        %v598 = vpop.f32.mrb[0].mxu0
        %v599 = vadd.f32 %v554, %v598
        %v600 = vpop.f32.mrb[0].mxu0
        %v601 = vpop.f32.mrb[0].mxu0
        %602 = vdwg.mxu0
        %603 = vmatprep.subr.bf16.mxu0 0
        %604 = vmatpush1.bf16.msra.mxu0 %v500
        %605 = vmatprep.subr.bf16.mxu0 0
        %606 = vmatpush1.bf16.msra.mxu0 %v503
        %607 = vmatprep.subr.bf16.mxu0 0
        %608 = vmatpush1.bf16.msra.mxu0 %v506
        %609 = vmatprep.subr.bf16.mxu0 0
        %610 = vmatpush1.bf16.msra.mxu0 %v509
        %611 = vmatprep.subr.bf16.mxu0 0
        %612 = vmatpush1.bf16.msra.mxu0 %v512
        %613 = vmatprep.subr.bf16.mxu0 0
        %614 = vmatpush1.bf16.msra.mxu0 %v515
        %615 = vmatprep.subr.bf16.mxu0 0
        %616 = vmatpush1.bf16.msra.mxu0 %v518
        %617 = vmatprep.subr.bf16.mxu0 0
        %618 = vmatpush1.bf16.msra.mxu0 %v521
        %619 = vmatprep.subr.bf16.mxu0 0
        %620 = vmatpush1.bf16.msra.mxu0 0
        %621 = vmatprep.subr.bf16.mxu0 0
        %622 = vmatpush1.bf16.msra.mxu0 0
        %623 = vmatprep.subr.bf16.mxu0 0
        %624 = vmatpush1.bf16.msra.mxu0 0
        %625 = vmatprep.subr.bf16.mxu0 0
        %626 = vmatpush1.bf16.msra.mxu0 0
        %627 = vmatprep.subr.bf16.mxu0 0
        %628 = vmatpush1.bf16.msra.mxu0 0
        %629 = vmatprep.subr.bf16.mxu0 0
        %630 = vmatpush1.bf16.msra.mxu0 0
        %631 = vmatprep.subr.bf16.mxu0 0
        %632 = vmatpush1.bf16.msra.mxu0 0
        %633 = vmatprep.subr.bf16.mxu0 0
        %634 = vmatpush1.bf16.msra.mxu0 0
        %635 = vmatprep.mubr.bf16.mxu0 0
        %636 = vmatmul.mubr.bf16.gmra.mrb[0].mxu0 %v384
        %v637 = vpop.f32.mrb[0].mxu0
        %v638 = vadd.f32 %v558, %v637
        %v639 = vpop.f32.mrb[0].mxu0
        %v640 = vpop.f32.mrb[0].mxu0
        %v641 = vpop.f32.mrb[0].mxu0
        %642 = vdwg.mxu0
        %v643 = vld [vmem:[#allocation5] sm:$0xff]
        %v644 = vld [vmem:[#allocation5 + $0x8] sm:$0xff]
        %v645 = vld [vmem:[#allocation5 + $0x10] sm:$0xff]
        %v646 = vld [vmem:[#allocation5 + $0x18] sm:$0xff]
        %v647 = vld [vmem:[#allocation5 + $0x20] sm:$0xf]
        %v648 = vld [vmem:[#allocation5 + $0x24] sm:$0xff]
        %v649 = vld [vmem:[#allocation5 + $0x2c] sm:$0xff]
        %v650 = vld [vmem:[#allocation5 + $0x34] sm:$0xff]
        %v651 = vld [vmem:[#allocation5 + $0x3c] sm:$0xff]
        %v652 = vld [vmem:[#allocation5 + $0x44] sm:$0xf]
        %v653 = vld [vmem:[#allocation5 + $0x48] sm:$0xff]
        %v654 = vld [vmem:[#allocation5 + $0x50] sm:$0xff]
        %v655 = vld [vmem:[#allocation5 + $0x58] sm:$0xff]
        %v656 = vld [vmem:[#allocation5 + $0x60] sm:$0xff]
        %v657 = vld [vmem:[#allocation5 + $0x68] sm:$0xf]
        %v658 = vld [vmem:[#allocation5 + $0x6c] sm:$0xff]
        %v659 = vld [vmem:[#allocation5 + $0x74] sm:$0xff]
        %v660 = vld [vmem:[#allocation5 + $0x7c] sm:$0xff]
        %v661 = vld [vmem:[#allocation5 + $0x84] sm:$0xff]
        %v662 = vld [vmem:[#allocation5 + $0x8c] sm:$0xf]
        %v663 = vld [vmem:[#allocation5 + $0x90] sm:$0xff]
        %v664 = vld [vmem:[#allocation5 + $0x98] sm:$0xff]
        %v665 = vld [vmem:[#allocation5 + $0xa0] sm:$0xff]
        %v666 = vld [vmem:[#allocation5 + $0xa8] sm:$0xff]
        %v667 = vld [vmem:[#allocation5 + $0xb0] sm:$0xf]
        %v668 = vld [vmem:[#allocation5 + $0xb4] sm:$0xff]
        %v669 = vld [vmem:[#allocation5 + $0xbc] sm:$0xff]
        %v670 = vld [vmem:[#allocation5 + $0xc4] sm:$0xff]
        %v671 = vld [vmem:[#allocation5 + $0xcc] sm:$0xff]
        %v672 = vld [vmem:[#allocation5 + $0xd4] sm:$0xf]
        %v673 = vld [vmem:[#allocation5 + $0xd8] sm:$0xff]
        %v674 = vld [vmem:[#allocation5 + $0xe0] sm:$0xff]
        %v675 = vld [vmem:[#allocation5 + $0xe8] sm:$0xff]
        %v676 = vld [vmem:[#allocation5 + $0xf0] sm:$0xff]
        %v677 = vld [vmem:[#allocation5 + $0xf8] sm:$0xf]
        %v678 = vld [vmem:[#allocation5 + $0xfc] sm:$0xff]
        %v679 = vld [vmem:[#allocation5 + $0x104] sm:$0xff]
        %v680 = vld [vmem:[#allocation5 + $0x10c] sm:$0xff]
        %v681 = vld [vmem:[#allocation5 + $0x114] sm:$0xff]
        %v682 = vld [vmem:[#allocation5 + $0x11c] sm:$0xf]
        %v683 = vld [vmem:[#allocation5 + $0x120] sm:$0xff]
        %v684 = vld [vmem:[#allocation5 + $0x128] sm:$0xff]
        %v685 = vld [vmem:[#allocation5 + $0x130] sm:$0xff]
        %v686 = vld [vmem:[#allocation5 + $0x138] sm:$0xff]
        %v687 = vld [vmem:[#allocation5 + $0x140] sm:$0xf]
        %v688 = vld [vmem:[#allocation5 + $0x144] sm:$0xff]
        %v689 = vld [vmem:[#allocation5 + $0x14c] sm:$0xff]
        %v690 = vld [vmem:[#allocation5 + $0x154] sm:$0xff]
        %v691 = vld [vmem:[#allocation5 + $0x15c] sm:$0xff]
        %v692 = vld [vmem:[#allocation5 + $0x164] sm:$0xf]
        %v693 = vld [vmem:[#allocation5 + $0x168] sm:$0xff]
        %v694 = vld [vmem:[#allocation5 + $0x170] sm:$0xff]
        %v695 = vld [vmem:[#allocation5 + $0x178] sm:$0xff]
        %v696 = vld [vmem:[#allocation5 + $0x180] sm:$0xff]
        %v697 = vld [vmem:[#allocation5 + $0x188] sm:$0xf]
        %v698 = vld [vmem:[#allocation5 + $0x18c] sm:$0xff]
        %v699 = vld [vmem:[#allocation5 + $0x194] sm:$0xff]
        %v700 = vld [vmem:[#allocation5 + $0x19c] sm:$0xff]
        %v701 = vld [vmem:[#allocation5 + $0x1a4] sm:$0xff]
        %v702 = vld [vmem:[#allocation5 + $0x1ac] sm:$0xf]
        %v703 = vld [vmem:[#allocation5 + $0x1b0] sm:$0xff]
        %v704 = vld [vmem:[#allocation5 + $0x1b8] sm:$0xff]
        %v705 = vld [vmem:[#allocation5 + $0x1c0] sm:$0xff]
        %v706 = vld [vmem:[#allocation5 + $0x1c8] sm:$0xff]
        %v707 = vld [vmem:[#allocation5 + $0x1d0] sm:$0xf]
        %v708 = vld [vmem:[#allocation5 + $0x1d4] sm:$0xff]
        %v709 = vld [vmem:[#allocation5 + $0x1dc] sm:$0xff]
        %v710 = vld [vmem:[#allocation5 + $0x1e4] sm:$0xff]
        %v711 = vld [vmem:[#allocation5 + $0x1ec] sm:$0xff]
        %v712 = vld [vmem:[#allocation5 + $0x1f4] sm:$0xf]
        %v713 = vld [vmem:[#allocation5 + $0x1f8] sm:$0xff]
        %v714 = vld [vmem:[#allocation5 + $0x200] sm:$0xff]
        %v715 = vld [vmem:[#allocation5 + $0x208] sm:$0xff]
        %v716 = vld [vmem:[#allocation5 + $0x210] sm:$0xff]
        %v717 = vld [vmem:[#allocation5 + $0x218] sm:$0xf]
        %v718 = vld [vmem:[#allocation5 + $0x21c] sm:$0xff]
        %v719 = vld [vmem:[#allocation5 + $0x224] sm:$0xff]
        %v720 = vld [vmem:[#allocation5 + $0x22c] sm:$0xff]
        %v721 = vld [vmem:[#allocation5 + $0x234] sm:$0xff]
        %v722 = vld [vmem:[#allocation5 + $0x23c] sm:$0xf]
        %v725 = vunpack.c.l.b16 %v382
        %v726 = vunpack.c.l.b16 %v383
        %v727 = vpack.c.b16 %v726, %v725
        %v809 = vunpack.c.l.b16 %v643
        %v810 = vunpack.c.h.b16 %v643
        %v811 = vunpack.c.l.b16 %v644
        %v812 = vunpack.c.h.b16 %v644
        %v813 = vunpack.c.l.b16 %v645
        %v814 = vunpack.c.h.b16 %v645
        %v815 = vunpack.c.l.b16 %v646
        %v816 = vunpack.c.h.b16 %v646
        %v817 = vunpack.c.l.b16 %v647
        %v818 = vunpack.c.l.b16 %v648
        %v819 = vunpack.c.h.b16 %v648
        %v820 = vunpack.c.l.b16 %v649
        %v821 = vunpack.c.h.b16 %v649
        %v822 = vunpack.c.l.b16 %v650
        %v823 = vunpack.c.h.b16 %v650
        %v824 = vunpack.c.l.b16 %v651
        %v825 = vunpack.c.h.b16 %v651
        %v826 = vunpack.c.l.b16 %v652
        %v827 = vunpack.c.l.b16 %v653
        %v828 = vunpack.c.h.b16 %v653
        %v829 = vunpack.c.l.b16 %v654
        %v830 = vunpack.c.h.b16 %v654
        %v831 = vunpack.c.l.b16 %v655
        %v832 = vunpack.c.h.b16 %v655
        %v833 = vunpack.c.l.b16 %v656
        %v834 = vunpack.c.h.b16 %v656
        %v835 = vunpack.c.l.b16 %v657
        %v836 = vunpack.c.l.b16 %v658
        %v837 = vunpack.c.h.b16 %v658
        %v838 = vunpack.c.l.b16 %v659
        %v839 = vunpack.c.h.b16 %v659
        %v840 = vunpack.c.l.b16 %v660
        %v841 = vunpack.c.h.b16 %v660
        %v842 = vunpack.c.l.b16 %v661
        %v843 = vunpack.c.h.b16 %v661
        %v844 = vunpack.c.l.b16 %v662
        %v845 = vunpack.c.l.b16 %v663
        %v846 = vunpack.c.h.b16 %v663
        %v847 = vunpack.c.l.b16 %v664
        %v848 = vunpack.c.h.b16 %v664
        %v849 = vunpack.c.l.b16 %v665
        %v850 = vunpack.c.h.b16 %v665
        %v851 = vunpack.c.l.b16 %v666
        %v852 = vunpack.c.h.b16 %v666
        %v853 = vunpack.c.l.b16 %v667
        %v854 = vunpack.c.l.b16 %v668
        %v855 = vunpack.c.h.b16 %v668
        %v856 = vunpack.c.l.b16 %v669
        %v857 = vunpack.c.h.b16 %v669
        %v858 = vunpack.c.l.b16 %v670
        %v859 = vunpack.c.h.b16 %v670
        %v860 = vunpack.c.l.b16 %v671
        %v861 = vunpack.c.h.b16 %v671
        %v862 = vunpack.c.l.b16 %v672
        %v863 = vunpack.c.l.b16 %v673
        %v864 = vunpack.c.h.b16 %v673
        %v865 = vunpack.c.l.b16 %v674
        %v866 = vunpack.c.h.b16 %v674
        %v867 = vunpack.c.l.b16 %v675
        %v868 = vunpack.c.h.b16 %v675
        %v869 = vunpack.c.l.b16 %v676
        %v870 = vunpack.c.h.b16 %v676
        %v871 = vunpack.c.l.b16 %v677
        %v872 = vunpack.c.l.b16 %v678
        %v873 = vunpack.c.h.b16 %v678
        %v874 = vunpack.c.l.b16 %v679
        %v875 = vunpack.c.h.b16 %v679
        %v876 = vunpack.c.l.b16 %v680
        %v877 = vunpack.c.h.b16 %v680
        %v878 = vunpack.c.l.b16 %v681
        %v879 = vunpack.c.h.b16 %v681
        %v880 = vunpack.c.l.b16 %v682
        %v881 = vunpack.c.l.b16 %v683
        %v882 = vunpack.c.h.b16 %v683
        %v883 = vunpack.c.l.b16 %v684
        %v884 = vunpack.c.h.b16 %v684
        %v885 = vunpack.c.l.b16 %v685
        %v886 = vunpack.c.h.b16 %v685
        %v887 = vunpack.c.l.b16 %v686
        %v888 = vunpack.c.h.b16 %v686
        %v889 = vunpack.c.l.b16 %v687
        %v890 = vunpack.c.l.b16 %v688
        %v891 = vunpack.c.h.b16 %v688
        %v892 = vunpack.c.l.b16 %v689
        %v893 = vunpack.c.h.b16 %v689
        %v894 = vunpack.c.l.b16 %v690
        %v895 = vunpack.c.h.b16 %v690
        %v896 = vunpack.c.l.b16 %v691
        %v897 = vunpack.c.h.b16 %v691
        %v898 = vunpack.c.l.b16 %v692
        %v899 = vunpack.c.l.b16 %v693
        %v900 = vunpack.c.h.b16 %v693
        %v901 = vunpack.c.l.b16 %v694
        %v902 = vunpack.c.h.b16 %v694
        %v903 = vunpack.c.l.b16 %v695
        %v904 = vunpack.c.h.b16 %v695
        %v905 = vunpack.c.l.b16 %v696
        %v906 = vunpack.c.h.b16 %v696
        %v907 = vunpack.c.l.b16 %v697
        %v908 = vunpack.c.l.b16 %v698
        %v909 = vunpack.c.h.b16 %v698
        %v910 = vunpack.c.l.b16 %v699
        %v911 = vunpack.c.h.b16 %v699
        %v912 = vunpack.c.l.b16 %v700
        %v913 = vunpack.c.h.b16 %v700
        %v914 = vunpack.c.l.b16 %v701
        %v915 = vunpack.c.h.b16 %v701
        %v916 = vunpack.c.l.b16 %v702
        %v917 = vunpack.c.l.b16 %v703
        %v918 = vunpack.c.h.b16 %v703
        %v919 = vunpack.c.l.b16 %v704
        %v920 = vunpack.c.h.b16 %v704
        %v921 = vunpack.c.l.b16 %v705
        %v922 = vunpack.c.h.b16 %v705
        %v923 = vunpack.c.l.b16 %v706
        %v924 = vunpack.c.h.b16 %v706
        %v925 = vunpack.c.l.b16 %v707
        %v926 = vunpack.c.l.b16 %v708
        %v927 = vunpack.c.h.b16 %v708
        %v928 = vunpack.c.l.b16 %v709
        %v929 = vunpack.c.h.b16 %v709
        %v930 = vunpack.c.l.b16 %v710
        %v931 = vunpack.c.h.b16 %v710
        %v932 = vunpack.c.l.b16 %v711
        %v933 = vunpack.c.h.b16 %v711
        %v934 = vunpack.c.l.b16 %v712
        %v935 = vunpack.c.l.b16 %v713
        %v936 = vunpack.c.h.b16 %v713
        %v937 = vunpack.c.l.b16 %v714
        %v938 = vunpack.c.h.b16 %v714
        %v939 = vunpack.c.l.b16 %v715
        %v940 = vunpack.c.h.b16 %v715
        %v941 = vunpack.c.l.b16 %v716
        %v942 = vunpack.c.h.b16 %v716
        %v943 = vunpack.c.l.b16 %v717
        %v944 = vunpack.c.l.b16 %v718
        %v945 = vunpack.c.h.b16 %v718
        %v946 = vunpack.c.l.b16 %v719
        %v947 = vunpack.c.h.b16 %v719
        %v948 = vunpack.c.l.b16 %v720
        %v949 = vunpack.c.h.b16 %v720
        %v950 = vunpack.c.l.b16 %v721
        %v951 = vunpack.c.h.b16 %v721
        %v952 = vunpack.c.l.b16 %v722
        %v953 = vpack.c.b16 %v818, %v809
        %v954 = vpack.c.b16 %v819, %v810
        %v955 = vpack.c.b16 %v820, %v811
        %v956 = vpack.c.b16 %v821, %v812
        %v957 = vpack.c.b16 %v822, %v813
        %v958 = vpack.c.b16 %v823, %v814
        %v959 = vpack.c.b16 %v824, %v815
        %v960 = vpack.c.b16 %v825, %v816
        %v961 = vpack.c.b16 %v826, %v817
        %v962 = vpack.c.b16 %v836, %v827
        %v963 = vpack.c.b16 %v837, %v828
        %v964 = vpack.c.b16 %v838, %v829
        %v965 = vpack.c.b16 %v839, %v830
        %v966 = vpack.c.b16 %v840, %v831
        %v967 = vpack.c.b16 %v841, %v832
        %v968 = vpack.c.b16 %v842, %v833
        %v969 = vpack.c.b16 %v843, %v834
        %v970 = vpack.c.b16 %v844, %v835
        %v971 = vpack.c.b16 %v854, %v845
        %v972 = vpack.c.b16 %v855, %v846
        %v973 = vpack.c.b16 %v856, %v847
        %v974 = vpack.c.b16 %v857, %v848
        %v975 = vpack.c.b16 %v858, %v849
        %v976 = vpack.c.b16 %v859, %v850
        %v977 = vpack.c.b16 %v860, %v851
        %v978 = vpack.c.b16 %v861, %v852
        %v979 = vpack.c.b16 %v862, %v853
        %v980 = vpack.c.b16 %v872, %v863
        %v981 = vpack.c.b16 %v873, %v864
        %v982 = vpack.c.b16 %v874, %v865
        %v983 = vpack.c.b16 %v875, %v866
        %v984 = vpack.c.b16 %v876, %v867
        %v985 = vpack.c.b16 %v877, %v868
        %v986 = vpack.c.b16 %v878, %v869
        %v987 = vpack.c.b16 %v879, %v870
        %v988 = vpack.c.b16 %v880, %v871
        %v989 = vpack.c.b16 %v890, %v881
        %v990 = vpack.c.b16 %v891, %v882
        %v991 = vpack.c.b16 %v892, %v883
        %v992 = vpack.c.b16 %v893, %v884
        %v993 = vpack.c.b16 %v894, %v885
        %v994 = vpack.c.b16 %v895, %v886
        %v995 = vpack.c.b16 %v896, %v887
        %v996 = vpack.c.b16 %v897, %v888
        %v997 = vpack.c.b16 %v898, %v889
        %v998 = vpack.c.b16 %v908, %v899
        %v999 = vpack.c.b16 %v909, %v900
        %v1000 = vpack.c.b16 %v910, %v901
        %v1001 = vpack.c.b16 %v911, %v902
        %v1002 = vpack.c.b16 %v912, %v903
        %v1003 = vpack.c.b16 %v913, %v904
        %v1004 = vpack.c.b16 %v914, %v905
        %v1005 = vpack.c.b16 %v915, %v906
        %v1006 = vpack.c.b16 %v916, %v907
        %v1007 = vpack.c.b16 %v926, %v917
        %v1008 = vpack.c.b16 %v927, %v918
        %v1009 = vpack.c.b16 %v928, %v919
        %v1010 = vpack.c.b16 %v929, %v920
        %v1011 = vpack.c.b16 %v930, %v921
        %v1012 = vpack.c.b16 %v931, %v922
        %v1013 = vpack.c.b16 %v932, %v923
        %v1014 = vpack.c.b16 %v933, %v924
        %v1015 = vpack.c.b16 %v934, %v925
        %v1016 = vpack.c.b16 %v944, %v935
        %v1017 = vpack.c.b16 %v945, %v936
        %v1018 = vpack.c.b16 %v946, %v937
        %v1019 = vpack.c.b16 %v947, %v938
        %v1020 = vpack.c.b16 %v948, %v939
        %v1021 = vpack.c.b16 %v949, %v940
        %v1022 = vpack.c.b16 %v950, %v941
        %v1023 = vpack.c.b16 %v951, %v942
        %v1024 = vpack.c.b16 %v952, %v943
        %1097 = vmatprep.subr.bf16.mxu0 %v954
        %1098 = vmatpush1.bf16.msra.mxu0 %v953
        %1099 = vmatprep.subr.bf16.mxu0 %v963
        %1100 = vmatpush1.bf16.msra.mxu0 %v962
        %1101 = vmatprep.subr.bf16.mxu0 %v972
        %1102 = vmatpush1.bf16.msra.mxu0 %v971
        %1103 = vmatprep.subr.bf16.mxu0 %v981
        %1104 = vmatpush1.bf16.msra.mxu0 %v980
        %1105 = vmatprep.subr.bf16.mxu0 %v990
        %1106 = vmatpush1.bf16.msra.mxu0 %v989
        %1107 = vmatprep.subr.bf16.mxu0 %v999
        %1108 = vmatpush1.bf16.msra.mxu0 %v998
        %1109 = vmatprep.subr.bf16.mxu0 %v1008
        %1110 = vmatpush1.bf16.msra.mxu0 %v1007
        %1111 = vmatprep.subr.bf16.mxu0 %v1017
        %1112 = vmatpush1.bf16.msra.mxu0 %v1016
        %1113 = vmatprep.subr.bf16.mxu0 0
        %1114 = vmatpush1.bf16.msra.mxu0 0
        %1115 = vmatprep.subr.bf16.mxu0 0
        %1116 = vmatpush1.bf16.msra.mxu0 0
        %1117 = vmatprep.subr.bf16.mxu0 0
        %1118 = vmatpush1.bf16.msra.mxu0 0
        %1119 = vmatprep.subr.bf16.mxu0 0
        %1120 = vmatpush1.bf16.msra.mxu0 0
        %1121 = vmatprep.subr.bf16.mxu0 0
        %1122 = vmatpush1.bf16.msra.mxu0 0
        %1123 = vmatprep.subr.bf16.mxu0 0
        %1124 = vmatpush1.bf16.msra.mxu0 0
        %1125 = vmatprep.subr.bf16.mxu0 0
        %1126 = vmatpush1.bf16.msra.mxu0 0
        %1127 = vmatprep.subr.bf16.mxu0 0
        %1128 = vmatpush1.bf16.msra.mxu0 0
        %1129 = vmatprep.mubr.bf16.mxu0 0
        %1130 = vmatmul.mubr.bf16.gmra.mrb[0].mxu0 %v727
        %v1131 = vpop.f32.mrb[0].mxu0
        %v1132 = vadd.f32 0.0, %v1131
        %v1133 = vpop.f32.mrb[0].mxu0
        %v1134 = vadd.f32 0.0, %v1133
        %v1135 = vpop.f32.mrb[0].mxu0
        %v1136 = vadd.f32 0.0, %v1135
        %v1137 = vpop.f32.mrb[0].mxu0
        %v1138 = vadd.f32 0.0, %v1137
        %1139 = vdwg.mxu0
        %1140 = vmatprep.subr.bf16.mxu0 %v956
        %1141 = vmatpush1.bf16.msra.mxu0 %v955
        %1142 = vmatprep.subr.bf16.mxu0 %v965
        %1143 = vmatpush1.bf16.msra.mxu0 %v964
        %1144 = vmatprep.subr.bf16.mxu0 %v974
        %1145 = vmatpush1.bf16.msra.mxu0 %v973
        %1146 = vmatprep.subr.bf16.mxu0 %v983
        %1147 = vmatpush1.bf16.msra.mxu0 %v982
        %1148 = vmatprep.subr.bf16.mxu0 %v992
        %1149 = vmatpush1.bf16.msra.mxu0 %v991
        %1150 = vmatprep.subr.bf16.mxu0 %v1001
        %1151 = vmatpush1.bf16.msra.mxu0 %v1000
        %1152 = vmatprep.subr.bf16.mxu0 %v1010
        %1153 = vmatpush1.bf16.msra.mxu0 %v1009
        %1154 = vmatprep.subr.bf16.mxu0 %v1019
        %1155 = vmatpush1.bf16.msra.mxu0 %v1018
        %1156 = vmatprep.subr.bf16.mxu0 0
        %1157 = vmatpush1.bf16.msra.mxu0 0
        %1158 = vmatprep.subr.bf16.mxu0 0
        %1159 = vmatpush1.bf16.msra.mxu0 0
        %1160 = vmatprep.subr.bf16.mxu0 0
        %1161 = vmatpush1.bf16.msra.mxu0 0
        %1162 = vmatprep.subr.bf16.mxu0 0
        %1163 = vmatpush1.bf16.msra.mxu0 0
        %1164 = vmatprep.subr.bf16.mxu0 0
        %1165 = vmatpush1.bf16.msra.mxu0 0
        %1166 = vmatprep.subr.bf16.mxu0 0
        %1167 = vmatpush1.bf16.msra.mxu0 0
        %1168 = vmatprep.subr.bf16.mxu0 0
        %1169 = vmatpush1.bf16.msra.mxu0 0
        %1170 = vmatprep.subr.bf16.mxu0 0
        %1171 = vmatpush1.bf16.msra.mxu0 0
        %1172 = vmatprep.mubr.bf16.mxu0 0
        %1173 = vmatmul.mubr.bf16.gmra.mrb[0].mxu0 %v727
        %v1174 = vpop.f32.mrb[0].mxu0
        %v1175 = vadd.f32 0.0, %v1174
        %v1176 = vpop.f32.mrb[0].mxu0
        %v1177 = vadd.f32 0.0, %v1176
        %v1178 = vpop.f32.mrb[0].mxu0
        %v1179 = vadd.f32 0.0, %v1178
        %v1180 = vpop.f32.mrb[0].mxu0
        %v1181 = vadd.f32 0.0, %v1180
        %1182 = vdwg.mxu0
        %1183 = vmatprep.subr.bf16.mxu0 %v958
        %1184 = vmatpush1.bf16.msra.mxu0 %v957
        %1185 = vmatprep.subr.bf16.mxu0 %v967
        %1186 = vmatpush1.bf16.msra.mxu0 %v966
        %1187 = vmatprep.subr.bf16.mxu0 %v976
        %1188 = vmatpush1.bf16.msra.mxu0 %v975
        %1189 = vmatprep.subr.bf16.mxu0 %v985
        %1190 = vmatpush1.bf16.msra.mxu0 %v984
        %1191 = vmatprep.subr.bf16.mxu0 %v994
        %1192 = vmatpush1.bf16.msra.mxu0 %v993
        %1193 = vmatprep.subr.bf16.mxu0 %v1003
        %1194 = vmatpush1.bf16.msra.mxu0 %v1002
        %1195 = vmatprep.subr.bf16.mxu0 %v1012
        %1196 = vmatpush1.bf16.msra.mxu0 %v1011
        %1197 = vmatprep.subr.bf16.mxu0 %v1021
        %1198 = vmatpush1.bf16.msra.mxu0 %v1020
        %1199 = vmatprep.subr.bf16.mxu0 0
        %1200 = vmatpush1.bf16.msra.mxu0 0
        %1201 = vmatprep.subr.bf16.mxu0 0
        %1202 = vmatpush1.bf16.msra.mxu0 0
        %1203 = vmatprep.subr.bf16.mxu0 0
        %1204 = vmatpush1.bf16.msra.mxu0 0
        %1205 = vmatprep.subr.bf16.mxu0 0
        %1206 = vmatpush1.bf16.msra.mxu0 0
        %1207 = vmatprep.subr.bf16.mxu0 0
        %1208 = vmatpush1.bf16.msra.mxu0 0
        %1209 = vmatprep.subr.bf16.mxu0 0
        %1210 = vmatpush1.bf16.msra.mxu0 0
        %1211 = vmatprep.subr.bf16.mxu0 0
        %1212 = vmatpush1.bf16.msra.mxu0 0
        %1213 = vmatprep.subr.bf16.mxu0 0
        %1214 = vmatpush1.bf16.msra.mxu0 0
        %1215 = vmatprep.mubr.bf16.mxu0 0
        %1216 = vmatmul.mubr.bf16.gmra.mrb[0].mxu0 %v727
        %v1217 = vpop.f32.mrb[0].mxu0
        %v1218 = vadd.f32 0.0, %v1217
        %v1219 = vpop.f32.mrb[0].mxu0
        %v1220 = vadd.f32 0.0, %v1219
        %v1221 = vpop.f32.mrb[0].mxu0
        %v1222 = vadd.f32 0.0, %v1221
        %v1223 = vpop.f32.mrb[0].mxu0
        %v1224 = vadd.f32 0.0, %v1223
        %1225 = vdwg.mxu0
        %1226 = vmatprep.subr.bf16.mxu0 %v960
        %1227 = vmatpush1.bf16.msra.mxu0 %v959
        %1228 = vmatprep.subr.bf16.mxu0 %v969
        %1229 = vmatpush1.bf16.msra.mxu0 %v968
        %1230 = vmatprep.subr.bf16.mxu0 %v978
        %1231 = vmatpush1.bf16.msra.mxu0 %v977
        %1232 = vmatprep.subr.bf16.mxu0 %v987
        %1233 = vmatpush1.bf16.msra.mxu0 %v986
        %1234 = vmatprep.subr.bf16.mxu0 %v996
        %1235 = vmatpush1.bf16.msra.mxu0 %v995
        %1236 = vmatprep.subr.bf16.mxu0 %v1005
        %1237 = vmatpush1.bf16.msra.mxu0 %v1004
        %1238 = vmatprep.subr.bf16.mxu0 %v1014
        %1239 = vmatpush1.bf16.msra.mxu0 %v1013
        %1240 = vmatprep.subr.bf16.mxu0 %v1023
        %1241 = vmatpush1.bf16.msra.mxu0 %v1022
        %1242 = vmatprep.subr.bf16.mxu0 0
        %1243 = vmatpush1.bf16.msra.mxu0 0
        %1244 = vmatprep.subr.bf16.mxu0 0
        %1245 = vmatpush1.bf16.msra.mxu0 0
        %1246 = vmatprep.subr.bf16.mxu0 0
        %1247 = vmatpush1.bf16.msra.mxu0 0
        %1248 = vmatprep.subr.bf16.mxu0 0
        %1249 = vmatpush1.bf16.msra.mxu0 0
        %1250 = vmatprep.subr.bf16.mxu0 0
        %1251 = vmatpush1.bf16.msra.mxu0 0
        %1252 = vmatprep.subr.bf16.mxu0 0
        %1253 = vmatpush1.bf16.msra.mxu0 0
        %1254 = vmatprep.subr.bf16.mxu0 0
        %1255 = vmatpush1.bf16.msra.mxu0 0
        %1256 = vmatprep.subr.bf16.mxu0 0
        %1257 = vmatpush1.bf16.msra.mxu0 0
        %1258 = vmatprep.mubr.bf16.mxu0 0
        %1259 = vmatmul.mubr.bf16.gmra.mrb[0].mxu0 %v727
        %v1260 = vpop.f32.mrb[0].mxu0
        %v1261 = vadd.f32 0.0, %v1260
        %v1262 = vpop.f32.mrb[0].mxu0
        %v1263 = vadd.f32 0.0, %v1262
        %v1264 = vpop.f32.mrb[0].mxu0
        %v1265 = vadd.f32 0.0, %v1264
        %v1266 = vpop.f32.mrb[0].mxu0
        %v1267 = vadd.f32 0.0, %v1266
        %1268 = vdwg.mxu0
        %1269 = vmatprep.subr.bf16.mxu0 0
        %1270 = vmatpush1.bf16.msra.mxu0 %v961
        %1271 = vmatprep.subr.bf16.mxu0 0
        %1272 = vmatpush1.bf16.msra.mxu0 %v970
        %1273 = vmatprep.subr.bf16.mxu0 0
        %1274 = vmatpush1.bf16.msra.mxu0 %v979
        %1275 = vmatprep.subr.bf16.mxu0 0
        %1276 = vmatpush1.bf16.msra.mxu0 %v988
        %1277 = vmatprep.subr.bf16.mxu0 0
        %1278 = vmatpush1.bf16.msra.mxu0 %v997
        %1279 = vmatprep.subr.bf16.mxu0 0
        %1280 = vmatpush1.bf16.msra.mxu0 %v1006
        %1281 = vmatprep.subr.bf16.mxu0 0
        %1282 = vmatpush1.bf16.msra.mxu0 %v1015
        %1283 = vmatprep.subr.bf16.mxu0 0
        %1284 = vmatpush1.bf16.msra.mxu0 %v1024
        %1285 = vmatprep.subr.bf16.mxu0 0
        %1286 = vmatpush1.bf16.msra.mxu0 0
        %1287 = vmatprep.subr.bf16.mxu0 0
        %1288 = vmatpush1.bf16.msra.mxu0 0
        %1289 = vmatprep.subr.bf16.mxu0 0
        %1290 = vmatpush1.bf16.msra.mxu0 0
        %1291 = vmatprep.subr.bf16.mxu0 0
        %1292 = vmatpush1.bf16.msra.mxu0 0
        %1293 = vmatprep.subr.bf16.mxu0 0
        %1294 = vmatpush1.bf16.msra.mxu0 0
        %1295 = vmatprep.subr.bf16.mxu0 0
        %1296 = vmatpush1.bf16.msra.mxu0 0
        %1297 = vmatprep.subr.bf16.mxu0 0
        %1298 = vmatpush1.bf16.msra.mxu0 0
        %1299 = vmatprep.subr.bf16.mxu0 0
        %1300 = vmatpush1.bf16.msra.mxu0 0
        %1301 = vmatprep.mubr.bf16.mxu0 0
        %1302 = vmatmul.mubr.bf16.gmra.mrb[0].mxu0 %v727
        %v1303 = vpop.f32.mrb[0].mxu0
        %v1304 = vadd.f32 0.0, %v1303
        %v1305 = vpop.f32.mrb[0].mxu0
        %v1306 = vpop.f32.mrb[0].mxu0
        %v1307 = vadd.f32 0.0, %v1306
        %v1308 = vpop.f32.mrb[0].mxu0
        %1309 = vdwg.mxu0
        %vm1312 = vcmask 1046528
        %v1313 = vrot.slane %v1134, 1
        %v1314 = vrot.slane %v1138, 1
        %v1315 = vsel %vm1312, %v1313, %v1314
        %v1319 = vsel %vm1312, %v1314, %v1313
        %v1320 = vadd.f32 %v1132, %v1315
        %v1321 = vadd.f32 %v1136, %v1319
        %v1324 = vrot.slane %v1177, 1
        %v1325 = vrot.slane %v1181, 1
        %v1326 = vsel %vm1312, %v1324, %v1325
        %v1330 = vsel %vm1312, %v1325, %v1324
        %v1331 = vadd.f32 %v1175, %v1326
        %v1332 = vadd.f32 %v1179, %v1330
        %vm1335 = vcmask 1045504
        %v1336 = vrot.slane %v1218, 2
        %v1337 = vrot.slane %v1222, 2
        %v1338 = vsel %vm1335, %v1336, %v1337
        %v1342 = vsel %vm1335, %v1337, %v1336
        %v1343 = vadd.f32 %v1331, %v1338
        %v1344 = vadd.f32 %v1332, %v1342
        %v1347 = vrot.slane %v1261, 1
        %v1348 = vrot.slane %v1265, 1
        %v1349 = vsel %vm1312, %v1347, %v1348
        %v1353 = vsel %vm1312, %v1348, %v1347
        %v1354 = vadd.f32 %v1220, %v1349
        %v1355 = vadd.f32 %v1224, %v1353
        %v1358 = vrot.slane %v1263, 2
        %v1359 = vrot.slane %v1267, 2
        %v1360 = vsel %vm1335, %v1358, %v1359
        %v1364 = vsel %vm1335, %v1359, %v1358
        %v1365 = vadd.f32 %v1354, %v1360
        %v1366 = vadd.f32 %v1355, %v1364
        %vm1369 = vcmask 1044480
        %v1370 = vrot.slane %v1304, 3
        %v1371 = vrot.slane %v1307, 3
        %v1372 = vsel %vm1369, %v1370, %v1371
        %v1376 = vsel %vm1369, %v1371, %v1370
        %v1377 = vadd.f32 %v1365, %v1372
        %v1378 = vadd.f32 %v1366, %v1376
        %v1379 = vlaneseq
        %v1380 = vshrl.u32 %v1379, 7
        %v1381 = vsub.s32 0, %v1380
        %v1382 = vrot.slane %v597, %v1381
        %v1383 = vlaneseq
        %v1384 = vshrl.u32 %v1383, 7
        %v1385 = vsub.s32 0, %v1384
        %v1386 = vrot.slane %v599, %v1385
        %v1387 = vlaneseq
        %v1388 = vshrl.u32 %v1387, 7
        %v1389 = vsub.s32 0, %v1388
        %v1390 = vrot.slane %v638, %v1389
        %v1391 = vadd.f32 %v1320, %v1382
        %v1392 = vadd.f32 %v1343, %v1386
        %v1393 = vadd.f32 %v1377, %v1390
        %v1394 = vadd.f32 %v1321, %v1382
        %v1395 = vadd.f32 %v1344, %v1386
        %v1396 = vadd.f32 %v1378, %v1390
        %v1397 = vmax.f32 %v1391, 0.0
        %v1398 = vmax.f32 %v1392, 0.0
        %v1399 = vmax.f32 %v1393, 0.0
        %v1400 = vmax.f32 %v1394, 0.0
        %v1401 = vmax.f32 %v1395, 0.0
        %v1402 = vmax.f32 %v1396, 0.0
        %v1403 = vlaneseq
        %v1404 = vshrl.u32 %v1403, 7
        %v1405 = vadd.s32 %v1404, 8
        %v1406 = vld [vmem:[%s5] sm:$0x7]
        %v1407 = vlaneseq
        %v1408 = vshrl.u32 %v1407, 7
        %v1409 = vsub.s32 0, %v1408
        %v1410 = vrot.slane %v1406, %v1409
        %v1411 = vlaneseq
        %v1412 = vshrl.u32 %v1411, 7
        %v1413 = vsub.s32 1, %v1412
        %v1414 = vrot.slane %v1406, %v1413
        %v1415 = vlaneseq
        %v1416 = vshrl.u32 %v1415, 7
        %v1417 = vsub.s32 2, %v1416
        %v1418 = vrot.slane %v1406, %v1417
        %vm1419 = vcmp.lt.s32.totalorder %v1404, %v1410
        %vm1420 = vcmp.lt.s32.totalorder %v1404, %v1414
        %vm1421 = vcmp.lt.s32.totalorder %v1404, %v1418
        %vm1422 = vcmp.lt.s32.totalorder %v1405, %v1410
        %vm1423 = vcmp.lt.s32.totalorder %v1405, %v1414
        %vm1424 = vcmp.lt.s32.totalorder %v1405, %v1418
        %v1425 = vsel %vm1419, %v1397, 0.0
        %v1426 = vsel %vm1420, %v1398, 0.0
        %v1427 = vsel %vm1421, %v1399, 0.0
        %v1428 = vsel %vm1422, %v1400, 0.0
        %v1429 = vsel %vm1423, %v1401, 0.0
        %v1430 = vsel %vm1424, %v1402, 0.0
        %v1431 = vmax.f32 %v1425, %v1428
        %v1432 = vrot.slane %v1431, 4
        %v1433 = vmax.f32 %v1431, %v1432
        %v1434 = vrot.slane %v1433, 2
        %v1435 = vmax.f32 %v1433, %v1434
        %v1436 = vrot.slane %v1435, 1
        %v1437 = vmax.f32 %v1435, %v1436
        %v1438 = vmax.f32 %v1426, %v1429
        %v1439 = vrot.slane %v1438, 4
        %v1440 = vmax.f32 %v1438, %v1439
        %v1441 = vrot.slane %v1440, 2
        %v1442 = vmax.f32 %v1440, %v1441
        %v1443 = vrot.slane %v1442, 1
        %v1444 = vmax.f32 %v1442, %v1443
        %v1445 = vmax.f32 %v1427, %v1430
        %v1446 = vrot.slane %v1445, 4
        %v1447 = vmax.f32 %v1445, %v1446
        %v1448 = vrot.slane %v1447, 2
        %v1449 = vmax.f32 %v1447, %v1448
        %v1450 = vrot.slane %v1449, 1
        %v1451 = vmax.f32 %v1449, %v1450
        %v1452 = vpack.c.bf16 %v1437, %v1437
        %v1453 = vpack.c.bf16 %v1444, %v1444
        %v1454 = vpack.c.bf16 %v1451, %v1451
        %v1455 = vld [vmem:[#allocation8] sm:$0xf]
        %v1456 = vld [vmem:[#allocation8 + $0x4] sm:$0xf]
        %v1457 = vld [vmem:[#allocation8 + $0x8] sm:$0xf]
        %v1458 = vld [vmem:[#allocation8 + $0xc] sm:$0xf]
        %v1459 = vld [vmem:[#allocation8 + $0x10] sm:$0xf]
        %v1460 = vld [vmem:[#allocation8 + $0x14] sm:$0xf]
        %v1461 = vld [vmem:[#allocation8 + $0x18] sm:$0xf]
        %v1462 = vld [vmem:[#allocation8 + $0x1c] sm:$0xf]
        %v1463 = vld [vmem:[#allocation8 + $0x20] sm:$0xf]
        %v1464 = vld [vmem:[#allocation8 + $0x24] sm:$0xf]
        %v1465 = vld [vmem:[#allocation8 + $0x28] sm:$0xf]
        %v1466 = vld [vmem:[#allocation8 + $0x2c] sm:$0xf]
        %v1467 = vld [vmem:[#allocation8 + $0x30] sm:$0xf]
        %v1468 = vld [vmem:[#allocation8 + $0x34] sm:$0xf]
        %v1469 = vld [vmem:[#allocation8 + $0x38] sm:$0xf]
        %v1470 = vld [vmem:[#allocation8 + $0x3c] sm:$0xf]
        %v1471 = vld [vmem:[#allocation8 + $0x40] sm:$0xf]
        %v1472 = vld [vmem:[#allocation8 + $0x44] sm:$0xf]
        %v1473 = vld [vmem:[#allocation8 + $0x48] sm:$0xf]
        %v1474 = vld [vmem:[#allocation8 + $0x4c] sm:$0xf]
        %v1475 = vld [vmem:[#allocation8 + $0x50] sm:$0xf]
        %v1476 = vld [vmem:[#allocation8 + $0x54] sm:$0xf]
        %v1477 = vld [vmem:[#allocation8 + $0x58] sm:$0xf]
        %v1478 = vld [vmem:[#allocation8 + $0x5c] sm:$0xf]
        %v1479 = vld [vmem:[#allocation8 + $0x60] sm:$0xf]
        %v1480 = vld [vmem:[#allocation8 + $0x64] sm:$0xf]
        %v1481 = vld [vmem:[#allocation8 + $0x68] sm:$0xf]
        %v1482 = vld [vmem:[#allocation8 + $0x6c] sm:$0xf]
        %v1483 = vld [vmem:[#allocation8 + $0x70] sm:$0xf]
        %v1484 = vld [vmem:[#allocation8 + $0x74] sm:$0xf]
        %v1485 = vld [vmem:[#allocation8 + $0x78] sm:$0xf]
        %v1486 = vld [vmem:[#allocation8 + $0x7c] sm:$0xf]
        %v1487 = vld [vmem:[#allocation8 + $0x80] sm:$0xf]
        %v1488 = vld [vmem:[#allocation8 + $0x84] sm:$0xf]
        %v1489 = vld [vmem:[#allocation8 + $0x88] sm:$0xf]
        %v1490 = vld [vmem:[#allocation8 + $0x8c] sm:$0xf]
        %v1491 = vld [vmem:[#allocation8 + $0x90] sm:$0xf]
        %v1492 = vld [vmem:[#allocation8 + $0x94] sm:$0xf]
        %v1493 = vld [vmem:[#allocation8 + $0x98] sm:$0xf]
        %v1494 = vld [vmem:[#allocation8 + $0x9c] sm:$0xf]
        %v1495 = vld [vmem:[#allocation8 + $0xa0] sm:$0xf]
        %v1496 = vld [vmem:[#allocation8 + $0xa4] sm:$0xf]
        %v1497 = vld [vmem:[#allocation8 + $0xa8] sm:$0xf]
        %v1498 = vld [vmem:[#allocation8 + $0xac] sm:$0xf]
        %v1499 = vld [vmem:[#allocation8 + $0xb0] sm:$0xf]
        %v1500 = vld [vmem:[#allocation8 + $0xb4] sm:$0xf]
        %v1501 = vld [vmem:[#allocation8 + $0xb8] sm:$0xf]
        %v1502 = vld [vmem:[#allocation8 + $0xbc] sm:$0xf]
        %v1503 = vld [vmem:[%s7] sm:$0x1]
        %v1552 = vunpack.c.l.b16 %v1455
        %v1553 = vunpack.c.l.b16 %v1456
        %v1554 = vunpack.c.l.b16 %v1457
        %v1555 = vunpack.c.l.b16 %v1458
        %v1556 = vunpack.c.l.b16 %v1459
        %v1557 = vunpack.c.l.b16 %v1460
        %v1558 = vunpack.c.l.b16 %v1461
        %v1559 = vunpack.c.l.b16 %v1462
        %v1560 = vunpack.c.l.b16 %v1463
        %v1561 = vunpack.c.l.b16 %v1464
        %v1562 = vunpack.c.l.b16 %v1465
        %v1563 = vunpack.c.l.b16 %v1466
        %v1564 = vunpack.c.l.b16 %v1467
        %v1565 = vunpack.c.l.b16 %v1468
        %v1566 = vunpack.c.l.b16 %v1469
        %v1567 = vunpack.c.l.b16 %v1470
        %v1568 = vunpack.c.l.b16 %v1471
        %v1569 = vunpack.c.l.b16 %v1472
        %v1570 = vunpack.c.l.b16 %v1473
        %v1571 = vunpack.c.l.b16 %v1474
        %v1572 = vunpack.c.l.b16 %v1475
        %v1573 = vunpack.c.l.b16 %v1476
        %v1574 = vunpack.c.l.b16 %v1477
        %v1575 = vunpack.c.l.b16 %v1478
        %v1576 = vunpack.c.l.b16 %v1479
        %v1577 = vunpack.c.l.b16 %v1480
        %v1578 = vunpack.c.l.b16 %v1481
        %v1579 = vunpack.c.l.b16 %v1482
        %v1580 = vunpack.c.l.b16 %v1483
        %v1581 = vunpack.c.l.b16 %v1484
        %v1582 = vunpack.c.l.b16 %v1485
        %v1583 = vunpack.c.l.b16 %v1486
        %v1584 = vunpack.c.l.b16 %v1487
        %v1585 = vunpack.c.l.b16 %v1488
        %v1586 = vunpack.c.l.b16 %v1489
        %v1587 = vunpack.c.l.b16 %v1490
        %v1588 = vunpack.c.l.b16 %v1491
        %v1589 = vunpack.c.l.b16 %v1492
        %v1590 = vunpack.c.l.b16 %v1493
        %v1591 = vunpack.c.l.b16 %v1494
        %v1592 = vunpack.c.l.b16 %v1495
        %v1593 = vunpack.c.l.b16 %v1496
        %v1594 = vunpack.c.l.b16 %v1497
        %v1595 = vunpack.c.l.b16 %v1498
        %v1596 = vunpack.c.l.b16 %v1499
        %v1597 = vunpack.c.l.b16 %v1500
        %v1598 = vunpack.c.l.b16 %v1501
        %v1599 = vunpack.c.l.b16 %v1502
        %v1600 = vpack.c.b16 %v1553, %v1552
        %v1601 = vpack.c.b16 %v1555, %v1554
        %v1602 = vpack.c.b16 %v1557, %v1556
        %v1603 = vpack.c.b16 %v1559, %v1558
        %v1604 = vpack.c.b16 %v1561, %v1560
        %v1605 = vpack.c.b16 %v1563, %v1562
        %v1606 = vpack.c.b16 %v1565, %v1564
        %v1607 = vpack.c.b16 %v1567, %v1566
        %v1608 = vpack.c.b16 %v1569, %v1568
        %v1609 = vpack.c.b16 %v1571, %v1570
        %v1610 = vpack.c.b16 %v1573, %v1572
        %v1611 = vpack.c.b16 %v1575, %v1574
        %v1612 = vpack.c.b16 %v1577, %v1576
        %v1613 = vpack.c.b16 %v1579, %v1578
        %v1614 = vpack.c.b16 %v1581, %v1580
        %v1615 = vpack.c.b16 %v1583, %v1582
        %v1616 = vpack.c.b16 %v1585, %v1584
        %v1617 = vpack.c.b16 %v1587, %v1586
        %v1618 = vpack.c.b16 %v1589, %v1588
        %v1619 = vpack.c.b16 %v1591, %v1590
        %v1620 = vpack.c.b16 %v1593, %v1592
        %v1621 = vpack.c.b16 %v1595, %v1594
        %v1622 = vpack.c.b16 %v1597, %v1596
        %v1623 = vpack.c.b16 %v1599, %v1598
        %1648 = vmatprep.subr.bf16.mxu0 0
        %1649 = vmatpush1.bf16.msra.mxu0 %v1600
        %1650 = vmatprep.subr.bf16.mxu0 0
        %1651 = vmatpush1.bf16.msra.mxu0 %v1601
        %1652 = vmatprep.subr.bf16.mxu0 0
        %1653 = vmatpush1.bf16.msra.mxu0 %v1602
        %1654 = vmatprep.subr.bf16.mxu0 0
        %1655 = vmatpush1.bf16.msra.mxu0 %v1603
        %1656 = vmatprep.subr.bf16.mxu0 0
        %1657 = vmatpush1.bf16.msra.mxu0 %v1604
        %1658 = vmatprep.subr.bf16.mxu0 0
        %1659 = vmatpush1.bf16.msra.mxu0 %v1605
        %1660 = vmatprep.subr.bf16.mxu0 0
        %1661 = vmatpush1.bf16.msra.mxu0 %v1606
        %1662 = vmatprep.subr.bf16.mxu0 0
        %1663 = vmatpush1.bf16.msra.mxu0 %v1607
        %1664 = vmatprep.subr.bf16.mxu0 0
        %1665 = vmatpush1.bf16.msra.mxu0 %v1608
        %1666 = vmatprep.subr.bf16.mxu0 0
        %1667 = vmatpush1.bf16.msra.mxu0 %v1609
        %1668 = vmatprep.subr.bf16.mxu0 0
        %1669 = vmatpush1.bf16.msra.mxu0 %v1610
        %1670 = vmatprep.subr.bf16.mxu0 0
        %1671 = vmatpush1.bf16.msra.mxu0 %v1611
        %1672 = vmatprep.subr.bf16.mxu0 0
        %1673 = vmatpush1.bf16.msra.mxu0 %v1612
        %1674 = vmatprep.subr.bf16.mxu0 0
        %1675 = vmatpush1.bf16.msra.mxu0 %v1613
        %1676 = vmatprep.subr.bf16.mxu0 0
        %1677 = vmatpush1.bf16.msra.mxu0 %v1614
        %1678 = vmatprep.subr.bf16.mxu0 0
        %1679 = vmatpush1.bf16.msra.mxu0 %v1615
        %1680 = vmatprep.mubr.bf16.mxu0 %v1453
        %1681 = vmatmul.mubr.bf16.gmra.mrb[0].mxu0 %v1452
        %v1682 = vpop.f32.mrb[0].mxu0
        %v1683 = vadd.f32 %v1503, %v1682
        %v1684 = vpop.f32.mrb[0].mxu0
        %v1685 = vpop.f32.mrb[0].mxu0
        %v1686 = vpop.f32.mrb[0].mxu0
        %1687 = vdwg.mxu0
        %1688 = vmatprep.subr.bf16.mxu0 0
        %1689 = vmatpush1.bf16.msra.mxu0 %v1616
        %1690 = vmatprep.subr.bf16.mxu0 0
        %1691 = vmatpush1.bf16.msra.mxu0 %v1617
        %1692 = vmatprep.subr.bf16.mxu0 0
        %1693 = vmatpush1.bf16.msra.mxu0 %v1618
        %1694 = vmatprep.subr.bf16.mxu0 0
        %1695 = vmatpush1.bf16.msra.mxu0 %v1619
        %1696 = vmatprep.subr.bf16.mxu0 0
        %1697 = vmatpush1.bf16.msra.mxu0 %v1620
        %1698 = vmatprep.subr.bf16.mxu0 0
        %1699 = vmatpush1.bf16.msra.mxu0 %v1621
        %1700 = vmatprep.subr.bf16.mxu0 0
        %1701 = vmatpush1.bf16.msra.mxu0 %v1622
        %1702 = vmatprep.subr.bf16.mxu0 0
        %1703 = vmatpush1.bf16.msra.mxu0 %v1623
        %1704 = vmatprep.subr.bf16.mxu0 0
        %1705 = vmatpush1.bf16.msra.mxu0 0
        %1706 = vmatprep.subr.bf16.mxu0 0
        %1707 = vmatpush1.bf16.msra.mxu0 0
        %1708 = vmatprep.subr.bf16.mxu0 0
        %1709 = vmatpush1.bf16.msra.mxu0 0
        %1710 = vmatprep.subr.bf16.mxu0 0
        %1711 = vmatpush1.bf16.msra.mxu0 0
        %1712 = vmatprep.subr.bf16.mxu0 0
        %1713 = vmatpush1.bf16.msra.mxu0 0
        %1714 = vmatprep.subr.bf16.mxu0 0
        %1715 = vmatpush1.bf16.msra.mxu0 0
        %1716 = vmatprep.subr.bf16.mxu0 0
        %1717 = vmatpush1.bf16.msra.mxu0 0
        %1718 = vmatprep.subr.bf16.mxu0 0
        %1719 = vmatpush1.bf16.msra.mxu0 0
        %1720 = vmatprep.mubr.bf16.mxu0 0
        %1721 = vmatmul.mubr.bf16.gmra.mrb[0].mxu0 %v1454
        %v1722 = vpop.f32.mrb[0].mxu0
        %v1723 = vadd.f32 %v1683, %v1722
        %v1724 = vpop.f32.mrb[0].mxu0
        %v1725 = vpop.f32.mrb[0].mxu0
        %v1726 = vpop.f32.mrb[0].mxu0
        %1727 = vdwg.mxu0
        %1728 = vst [vmem:[%s377] sm:$0x1] %v1723
        %s1729 = sand.u32 %s213, 1
        %s1730 = scalar_lea.sflag [#allocation4], %s1729
        %s1731 = sand.u32 %s213, 1
        %s1732 = scalar_lea.vmem [#allocation10], %s1731
        // Predicated region
        $region69: #{tpu_custom_call.1} parent=51 // pred_check
          %p1733 = pneg %p223
        $region70: #{tpu_custom_call.1} parent=51 // pred_check_branch
          %1735 = sbr.rel (%p1733) target = $region72
        $region71: #{tpu_custom_call.1} parent=51 // pred_region
          %s1737 = ssub.s32 16, 16
          %1738 = vsyncadd %s1730, %s1737
          %s1739 = smul.addr %s27, 16
          %s1740 = scalar_lea.hbm %s8, %s1739
          %s1742 = sshll.u32 %s1732, 4
          %s1743 = int_to_ptr.vmem [resolvable:$true] %s1742
          %1745 = dma.vmem_to_hbm [thread:$0]  %s1743, 16, %s1740, %s1730
        $region72: #{tpu_custom_call.1} parent=51 // pred_fallthru
          _
      $region52: #{tpu_custom_call.1} parent=5 // pred_fallthru
        _
      %p1746 = scmp.le.s32.totalorder 2, %s22
      // Predicated region
      $region73: #{tpu_custom_call.1} parent=5 // pred_check
        %p1747 = pneg %p1746
      $region74: #{tpu_custom_call.1} parent=5 // pred_check_branch
        %1749 = sbr.rel (%p1747) target = $region76
      $region75: #{tpu_custom_call.1} parent=5 // pred_region
        %s1750 = ssub.s32 %s22, 2
        // Predicated region
        $region77: #{tpu_custom_call.1} parent=75 // pred_check
          %p1751 = pneg %p229
        $region78: #{tpu_custom_call.1} parent=75 // pred_check_branch
          %1753 = sbr.rel (%p1751) target = $region80
        $region79: #{tpu_custom_call.1} parent=75 // pred_region
          %s1754 = sand.u32 %s214, 1
          %s1755 = scalar_lea.sflag [#allocation4], %s1754
          %s1756 = sand.u32 %s214, 1
          %s1757 = scalar_lea.vmem [#allocation10], %s1756
          %1758 = dma.done %s1755, 16
        $region80: #{tpu_custom_call.1} parent=75 // pred_fallthru
          _
      $region76: #{tpu_custom_call.1} parent=5 // pred_fallthru
        _
    $region6: #{tpu_custom_call.1} parent=1 // loop_footer
      %s26 = sadd.s32 1, %s22
    $region7: #{tpu_custom_call.1} parent=1 // loop_footer_branch
      %21 = sbr.rel target = $region3
    $region8: #{tpu_custom_call.1} parent=1 // loop_exit
      _
    %1759 = vsyncpa [#allocation3], 1
    %s1760 = scalar_lea.sflag [#allocation3], 1
    %1761 = vsyncpa %s1760, 1
    %1762 = vsyncpa [#allocation6], 1
    %1763 = vsyncpa [#allocation9], 1
    %1764 = vsyncpa [#allocation4], 1
    %s1765 = scalar_lea.sflag [#allocation4], 1
    %1766 = vsyncpa %s1765, 1

</llo_original>
